<compile_context>
chip_gen: v7x
topology: tpu7x:2x2x1
jax: 0.10.0
libtpu: 0.0.40
codegen_flags: <defaults>
</compile_context>

<pallas_src>
import functools

import jax
import jax.numpy as jnp
from jax import lax
from jax.experimental import pallas as pl
from jax.experimental.pallas import tpu as pltpu

LAMBDAS = 8e-5
TOP_ANOMALY_FRAMES = 3
TOP_NORMAL_FRAMES = 3
MS_EPSILON = 0.1          # MultiSimilarityMiner default
TRIPLET_MARGIN = 0.05     # TripletMarginLoss default


# ----------------------------------------------------------------------------
# Kernel 1: per-frame squared distances to the (paired) anchor + smoothness sum
# ----------------------------------------------------------------------------
def _dist_kernel(order_ref, x_ref, d_ref, sm_ref, *, nv):
    # x_ref: (bs, F, D) full batch in VMEM.
    # order_ref (SMEM): (bs,) video ids, anomalous videos first (ascending),
    #                   then normal videos (ascending) -> pairing by position.
    D = x_ref.shape[2]
    ones_row = jnp.ones((1, D), jnp.float32)

    def lane_rowsum(m):
        # (F', D) -> (1, F') row of per-frame sums, lane-dense, via the MXU
        # (avoids a lane-reduction + sublane->lane relayout).
        return lax.dot_general(ones_row, m, (((1,), (1,)), ((), ())),
                               preferred_element_type=jnp.float32)

    rows = []
    anchors = []
    sm = jnp.zeros((1, 1), jnp.float32)

    for v in range(nv):                                   # anomalous videos
        a = x_ref[order_ref[v]].astype(jnp.float32)       # (F, D)
        anchor = a[0:1, :]
        anchors.append(anchor)
        da = a - anchor
        rows.append(lane_rowsum(da * da))                 # (1, F) squared dist
        td = a[1:, :] - a[:-1, :]                         # temporal smoothness
        sm = sm + jnp.sum(jnp.sum(td * td, axis=1, keepdims=True),
                          axis=0, keepdims=True)

    for v in range(nv):                                   # normal videos
        n = x_ref[order_ref[nv + v]].astype(jnp.float32)  # (F, D)
        dn = n - anchors[v]                               # paired anchor
        # squared distance (sqrt dropped: monotone, identical top-k ranks)
        rows.append(lane_rowsum(dn * dn))                 # (1, F)

    d_ref[...] = jnp.concatenate(rows, axis=0)            # (2*nv, F) lane-dense
    sm_ref[...] = sm                                      # (1, 1) scalar sum


def _run_dist_kernel(x, order, nv):
    bs, F, D = x.shape
    kernel = functools.partial(_dist_kernel, nv=nv)
    return pl.pallas_call(
        kernel,
        out_shape=(
            jax.ShapeDtypeStruct((2 * nv, F), jnp.float32),
            jax.ShapeDtypeStruct((1, 1), jnp.float32),
        ),
        grid_spec=pltpu.PrefetchScalarGridSpec(
            num_scalar_prefetch=1,
            grid=(1,),
            in_specs=[pl.BlockSpec((bs, F, D), lambda i, o: (0, 0, 0))],
            out_specs=(
                pl.BlockSpec((2 * nv, F), lambda i, o: (0, 0)),
                pl.BlockSpec((1, 1), lambda i, o: (0, 0)),
            ),
        ),
        compiler_params=pltpu.CompilerParams(
            dimension_semantics=("arbitrary",)),
    )(order, x)


# ----------------------------------------------------------------------------
# Kernel 2: in-kernel frame gather + MultiSimilarityMiner + TripletMarginLoss
# ----------------------------------------------------------------------------
def _metric_kernel(sel_ref, x_ref, out_ref,
                   e_ref, dm_ref, hp_ref, hn_ref, acc_ref, cnt_ref, *, na):
    # sel_ref (SMEM): (M,) row indices into the flattened (bs*F, D) frame matrix.
    # Static label layout: rows [0, na) are class 1, rows [na, M) are class 0.
    M, _ = e_ref.shape
    unroll = True if M <= 32 else 4

    # ---- gather the M selected frame rows from VMEM (no XLA gather/concat) ---
    def gather_body(i, carry):
        e_ref[pl.ds(i, 1), :] = x_ref[pl.ds(sel_ref[i], 1), :]
        return carry

    lax.fori_loop(0, M, gather_body, 0, unroll=unroll)

    E = e_ref[...].astype(jnp.float32)                     # (M, D)

    # ---- cosine similarity / L2-of-normalized distance (both symmetric) -----
    sq = jnp.sum(E * E, axis=-1, keepdims=True)            # (M, 1)
    En = E * lax.rsqrt(jnp.maximum(sq, jnp.float32(1e-24)))
    S = lax.dot_general(En, En, (((1,), (1,)), ((), ())),
                        preferred_element_type=jnp.float32)  # (M, M)
    Dm = jnp.sqrt(jnp.maximum(2.0 - 2.0 * S, 0.0))           # (M, M)

    # ---- static-label masks (no label inputs, pure iota compares) -----------
    ri = lax.broadcasted_iota(jnp.int32, (M, M), 0)
    ci = lax.broadcasted_iota(jnp.int32, (M, M), 1)
    same = jnp.logical_not(jnp.logical_xor(ri < na, ci < na))
    diag = ri == ci
    pos_mask = jnp.logical_and(same, jnp.logical_not(diag))   # symmetric
    neg_mask = jnp.logical_not(same)                          # symmetric

    NEG = jnp.float32(-1e30)
    POS = jnp.float32(1e30)
    # Anchor on the LANE axis (S is symmetric): reduce over sublanes.
    max_neg = jnp.max(jnp.where(neg_mask, S, NEG), axis=0, keepdims=True)  # (1,M)
    min_pos = jnp.min(jnp.where(pos_mask, S, POS), axis=0, keepdims=True)  # (1,M)

    eps = jnp.float32(MS_EPSILON)
    # "Transposed" hard-pair masks: hp[p, a] / hn[n, a] with anchor a on lanes.
    hp = jnp.logical_and(pos_mask, (S - eps) < max_neg)
    hn = jnp.logical_and(neg_mask, (S + eps) > min_pos)

    dm_ref[...] = Dm
    hp_ref[...] = hp.astype(jnp.float32)
    hn_ref[...] = hn.astype(jnp.float32)
    acc_ref[...] = jnp.zeros_like(acc_ref)
    cnt_ref[...] = jnp.zeros_like(cnt_ref)

    margin = jnp.float32(TRIPLET_MARGIN)

    # Triplets = all (a, p, n) with hard_pos[a, p] and hard_neg[a, n]
    # (pytorch-metric-learning convert_to_triplets on a pair-miner output).
    def p_body(p, carry):
        d_ap = dm_ref[pl.ds(p, 1), :]      # (1, M): d(a, p), anchors on lanes
        hp_row = hp_ref[pl.ds(p, 1), :]    # (1, M): hard_pos[a, p]
        dm_all = dm_ref[...]               # (M, M): dm_all[n, a] = d(a, n)
        hn_all = hn_ref[...]               # (M, M): hard_neg[a, n]
        viol = d_ap - dm_all + margin
        nz = jnp.logical_and(hp_row * hn_all > 0.0, viol > 0.0)
        acc_ref[...] = acc_ref[...] + jnp.where(nz, viol, 0.0)
        cnt_ref[...] = cnt_ref[...] + nz.astype(jnp.float32)
        return carry

    lax.fori_loop(0, M, p_body, 0, unroll=unroll)

    # Single deferred reduction; divide happens in the wrapper.
    total = jnp.sum(jnp.sum(acc_ref[...], axis=1, keepdims=True),
                    axis=0, keepdims=True)
    count = jnp.sum(jnp.sum(cnt_ref[...], axis=1, keepdims=True),
                    axis=0, keepdims=True)
    out_ref[...] = jnp.concatenate([total, count], axis=1)   # (1, 2)


def _run_metric_kernel(x_flat, sel, na):
    NF, D = x_flat.shape
    M = int(sel.shape[0])
    kernel = functools.partial(_metric_kernel, na=na)
    out = pl.pallas_call(
        kernel,
        out_shape=jax.ShapeDtypeStruct((1, 2), jnp.float32),
        grid_spec=pltpu.PrefetchScalarGridSpec(
            num_scalar_prefetch=1,
            grid=(1,),
            in_specs=[pl.BlockSpec((NF, D), lambda i, s: (0, 0))],
            out_specs=pl.BlockSpec((1, 2), lambda i, s: (0, 0)),
            scratch_shapes=[
                pltpu.VMEM((M, D), x_flat.dtype),    # gathered embeddings
                pltpu.VMEM((M, M), jnp.float32),     # Dm
                pltpu.VMEM((M, M), jnp.float32),     # hard_pos (transposed)
                pltpu.VMEM((M, M), jnp.float32),     # hard_neg (transposed)
                pltpu.VMEM((M, M), jnp.float32),     # loss accumulator
                pltpu.VMEM((M, M), jnp.float32),     # nonzero-count accumulator
            ],
        ),
        compiler_params=pltpu.CompilerParams(
            dimension_semantics=("arbitrary",),
            vmem_limit_bytes=32 * 1024 * 1024,
        ),
    )(sel, x_flat)
    return out[0, 0], out[0, 1]


# ----------------------------------------------------------------------------
# Forward pass (wrapper / glue)
# ----------------------------------------------------------------------------
def forward(normalized_embeddings, y_true):
    x = normalized_embeddings.astype(jnp.float32)
    bs, F, D = x.shape
    # TODO(synk): assumes a balanced batch (bs//2 anomalous, bs//2 normal) —
    # the reference module's label construction makes the same assumption.
    nv = bs // 2

    y = y_true.astype(jnp.int32)
    # Deterministic split: anomalous (y==1) video ids first (ascending index),
    # then normal video ids (ascending index)  ==  torch.where ordering.
    order = jnp.argsort(y * (-bs) + jnp.arange(bs, dtype=jnp.int32)).astype(jnp.int32)

    # Kernel 1: squared distances to the (paired) anchor + smoothness scalar.
    d_all, smooth_sum = _run_dist_kernel(x, order, nv)       # (2nv, F), (1, 1)

    # Top-k frame selection (tiny XLA op on (nv, F) arrays).  Same SET of
    # frames as argsort[-K:]; the metric loss is invariant to within-class
    # row order, so ordering differences do not change the result.
    _, tp_inds = lax.top_k(d_all[:nv], TOP_ANOMALY_FRAMES)   # (nv, Kp)
    _, fp_inds = lax.top_k(d_all[nv:], TOP_NORMAL_FRAMES)    # (nv, Kn)
    anom_vids = order[:nv]
    norm_vids = order[nv:]
    sel = jnp.concatenate(
        [(anom_vids[:, None] * F + tp_inds).reshape(-1),
         (norm_vids[:, None] * F + fp_inds).reshape(-1)]).astype(jnp.int32)

    na = nv * TOP_ANOMALY_FRAMES
    total, count = _run_metric_kernel(x.reshape(bs * F, D), sel, na)
    # AvgNonZeroReducer: mean over nonzero triplet losses, 0 if none.
    triplet_loss = jnp.where(count > 0.0, total / jnp.maximum(count, 1.0), 0.0)

    # (triplet_loss + lambdas * smoothed).mean() with scalar triplet_loss
    smooth_mean = smooth_sum[0, 0] / jnp.float32(nv * (F - 1))
    return triplet_loss + jnp.float32(LAMBDAS) * smooth_mean


if __name__ == "__main__":
    key = jax.random.PRNGKey(0)
    bs, segm_len, embed_dim = 4, 8, 128
    x = jax.random.normal(key, (bs, segm_len, embed_dim), dtype=jnp.float32)
    # the module expects already-normalized embeddings
    x = x / jnp.linalg.norm(x, axis=-1, keepdims=True)
    y_true = jnp.array([1, 1, 0, 0], dtype=jnp.int32)  # bs//2 anomalous, bs//2 normal

    loss = jax.jit(forward)(x, y_true)
    jax.block_until_ready(loss)
    assert loss.shape == () and bool(jnp.isfinite(loss))
    print("KERNEL_OK")
</pallas_src>

<mosaic_0001>
module attributes {stable_mosaic.version = 11 : i64} {
  func.func @_dist_kernel(%arg0: i32, %arg1: memref<4xi32, #tpu.memory_space<smem>>, %arg2: memref<4x8x128xf32, #tpu.memory_space<vmem>>, %arg3: memref<4x8xf32, #tpu.memory_space<vmem>>, %arg4: memref<1x1xf32, #tpu.memory_space<vmem>>) attributes {dimension_semantics = [#tpu.dimension_semantics<arbitrary>], iteration_bounds = array<i64: 1>, scalar_prefetch = 1 : i64, scratch_operands = 0 : i64, tpu.core_type = #tpu.core_type<tc>, window_params = [{pipeline_mode = #tpu.pipeline_mode<synchronous>, transform_indices = @transform_0, window_bounds = array<i64: 4, 8, 128>}, {pipeline_mode = #tpu.pipeline_mode<synchronous>, transform_indices = @transform_1, window_bounds = array<i64: 4, 8>}, {pipeline_mode = #tpu.pipeline_mode<synchronous>, transform_indices = @transform_2, window_bounds = array<i64: 1, 1>}]} {
    %cst = arith.constant 1.000000e+00 : f32
    %0 = vector.broadcast %cst : f32 to vector<1x128xf32>
    %cst_0 = arith.constant 0.000000e+00 : f32
    %1 = vector.broadcast %cst_0 : f32 to vector<1x1xf32>
    %c0 = arith.constant 0 : index
    %2 = memref.load %arg1[%c0] : memref<4xi32, #tpu.memory_space<smem>>
    %3 = arith.index_cast %2 : i32 to index
    %c0_1 = arith.constant 0 : index
    %c0_2 = arith.constant 0 : index
    %4 = vector.load %arg2[%3, %c0_1, %c0_2] : memref<4x8x128xf32, #tpu.memory_space<vmem>>, vector<1x8x128xf32>
    %5 = vector.shape_cast %4 : vector<1x8x128xf32> to vector<8x128xf32>
    %6 = vector.extract_strided_slice %5 {offsets = [0, 0], sizes = [1, 128], strides = [1, 1]} : vector<8x128xf32> to vector<1x128xf32>
    %7 = vector.broadcast %6 : vector<1x128xf32> to vector<8x128xf32>
    %8 = arith.subf %5, %7 : vector<8x128xf32>
    %9 = arith.mulf %8, %8 : vector<8x128xf32>
    %cst_3 = arith.constant dense<0.000000e+00> : vector<1x8xf32>
    %10 = tpu.matmul %0, %9, %cst_3 {dimension_numbers = #tpu.dot_dimension_numbers<[1], [1], [0], [0], [0, 0, 1, 0], [], []>} : vector<1x128xf32>, vector<8x128xf32>, vector<1x8xf32> -> vector<1x8xf32>
    %11 = vector.extract_strided_slice %5 {offsets = [1, 0], sizes = [7, 128], strides = [1, 1]} : vector<8x128xf32> to vector<7x128xf32>
    %12 = vector.extract_strided_slice %5 {offsets = [0, 0], sizes = [7, 128], strides = [1, 1]} : vector<8x128xf32> to vector<7x128xf32>
    %13 = arith.subf %11, %12 : vector<7x128xf32>
    %14 = arith.mulf %13, %13 : vector<7x128xf32>
    %cst_4 = arith.constant dense<0.000000e+00> : vector<7xf32>
    %15 = vector.multi_reduction <add>, %14, %cst_4 [1] : vector<7x128xf32> to vector<7xf32>
    %16 = vector.shape_cast %15 : vector<7xf32> to vector<7x1xf32>
    %cst_5 = arith.constant dense<0.000000e+00> : vector<1xf32>
    %17 = vector.multi_reduction <add>, %16, %cst_5 [0] : vector<7x1xf32> to vector<1xf32>
    %18 = vector.shape_cast %17 : vector<1xf32> to vector<1x1xf32>
    %19 = arith.addf %1, %18 : vector<1x1xf32>
    %c1 = arith.constant 1 : index
    %20 = memref.load %arg1[%c1] : memref<4xi32, #tpu.memory_space<smem>>
    %21 = arith.index_cast %20 : i32 to index
    %c0_6 = arith.constant 0 : index
    %c0_7 = arith.constant 0 : index
    %22 = vector.load %arg2[%21, %c0_6, %c0_7] : memref<4x8x128xf32, #tpu.memory_space<vmem>>, vector<1x8x128xf32>
    %23 = vector.shape_cast %22 : vector<1x8x128xf32> to vector<8x128xf32>
    %24 = vector.extract_strided_slice %23 {offsets = [0, 0], sizes = [1, 128], strides = [1, 1]} : vector<8x128xf32> to vector<1x128xf32>
    %25 = vector.broadcast %24 : vector<1x128xf32> to vector<8x128xf32>
    %26 = arith.subf %23, %25 : vector<8x128xf32>
    %27 = arith.mulf %26, %26 : vector<8x128xf32>
    %cst_8 = arith.constant dense<0.000000e+00> : vector<1x8xf32>
    %28 = tpu.matmul %0, %27, %cst_8 {dimension_numbers = #tpu.dot_dimension_numbers<[1], [1], [0], [0], [0, 0, 1, 0], [], []>} : vector<1x128xf32>, vector<8x128xf32>, vector<1x8xf32> -> vector<1x8xf32>
    %29 = vector.extract_strided_slice %23 {offsets = [1, 0], sizes = [7, 128], strides = [1, 1]} : vector<8x128xf32> to vector<7x128xf32>
    %30 = vector.extract_strided_slice %23 {offsets = [0, 0], sizes = [7, 128], strides = [1, 1]} : vector<8x128xf32> to vector<7x128xf32>
    %31 = arith.subf %29, %30 : vector<7x128xf32>
    %32 = arith.mulf %31, %31 : vector<7x128xf32>
    %cst_9 = arith.constant dense<0.000000e+00> : vector<7xf32>
    %33 = vector.multi_reduction <add>, %32, %cst_9 [1] : vector<7x128xf32> to vector<7xf32>
    %34 = vector.shape_cast %33 : vector<7xf32> to vector<7x1xf32>
    %cst_10 = arith.constant dense<0.000000e+00> : vector<1xf32>
    %35 = vector.multi_reduction <add>, %34, %cst_10 [0] : vector<7x1xf32> to vector<1xf32>
    %36 = vector.shape_cast %35 : vector<1xf32> to vector<1x1xf32>
    %37 = arith.addf %19, %36 : vector<1x1xf32>
    %c2 = arith.constant 2 : index
    %38 = memref.load %arg1[%c2] : memref<4xi32, #tpu.memory_space<smem>>
    %39 = arith.index_cast %38 : i32 to index
    %c0_11 = arith.constant 0 : index
    %c0_12 = arith.constant 0 : index
    %40 = vector.load %arg2[%39, %c0_11, %c0_12] : memref<4x8x128xf32, #tpu.memory_space<vmem>>, vector<1x8x128xf32>
    %41 = vector.shape_cast %40 : vector<1x8x128xf32> to vector<8x128xf32>
    %42 = vector.broadcast %6 : vector<1x128xf32> to vector<8x128xf32>
    %43 = arith.subf %41, %42 : vector<8x128xf32>
    %44 = arith.mulf %43, %43 : vector<8x128xf32>
    %cst_13 = arith.constant dense<0.000000e+00> : vector<1x8xf32>
    %45 = tpu.matmul %0, %44, %cst_13 {dimension_numbers = #tpu.dot_dimension_numbers<[1], [1], [0], [0], [0, 0, 1, 0], [], []>} : vector<1x128xf32>, vector<8x128xf32>, vector<1x8xf32> -> vector<1x8xf32>
    %c3 = arith.constant 3 : index
    %46 = memref.load %arg1[%c3] : memref<4xi32, #tpu.memory_space<smem>>
    %47 = arith.index_cast %46 : i32 to index
    %c0_14 = arith.constant 0 : index
    %c0_15 = arith.constant 0 : index
    %48 = vector.load %arg2[%47, %c0_14, %c0_15] : memref<4x8x128xf32, #tpu.memory_space<vmem>>, vector<1x8x128xf32>
    %49 = vector.shape_cast %48 : vector<1x8x128xf32> to vector<8x128xf32>
    %50 = vector.broadcast %24 : vector<1x128xf32> to vector<8x128xf32>
    %51 = arith.subf %49, %50 : vector<8x128xf32>
    %52 = arith.mulf %51, %51 : vector<8x128xf32>
    %cst_16 = arith.constant dense<0.000000e+00> : vector<1x8xf32>
    %53 = tpu.matmul %0, %52, %cst_16 {dimension_numbers = #tpu.dot_dimension_numbers<[1], [1], [0], [0], [0, 0, 1, 0], [], []>} : vector<1x128xf32>, vector<8x128xf32>, vector<1x8xf32> -> vector<1x8xf32>
    %54 = tpu.concatenate %10, %28, %45, %53 in 0 : vector<1x8xf32>, vector<1x8xf32>, vector<1x8xf32>, vector<1x8xf32> -> vector<4x8xf32>
    %c0_17 = arith.constant 0 : index
    %c0_18 = arith.constant 0 : index
    %55 = vector.load %arg3[%c0_17, %c0_18] : memref<4x8xf32, #tpu.memory_space<vmem>>, vector<4x8xf32>
    tpu.vector_store %arg3[%c0_17, %c0_18], %54 {strides = array<i32>} : memref<4x8xf32, #tpu.memory_space<vmem>>, vector<4x8xf32>,
    %c0_19 = arith.constant 0 : index
    %c0_20 = arith.constant 0 : index
    %56 = vector.load %arg4[%c0_19, %c0_20] : memref<1x1xf32, #tpu.memory_space<vmem>>, vector<1x1xf32>
    tpu.vector_store %arg4[%c0_19, %c0_20], %37 {strides = array<i32>} : memref<1x1xf32, #tpu.memory_space<vmem>>, vector<1x1xf32>,
    return
  }
  func.func @transform_0(%arg0: i32, %arg1: memref<4xi32, #tpu.memory_space<smem>>) -> (i32, i32, i32) {
    %c0_i32 = arith.constant 0 : i32
    %c0_i32_0 = arith.constant 0 : i32
    %c0_i32_1 = arith.constant 0 : i32
    %c0_i32_2 = arith.constant 0 : i32
    return %c0_i32, %c0_i32_0, %c0_i32_1 : i32, i32, i32
  }
  func.func @transform_1(%arg0: i32, %arg1: memref<4xi32, #tpu.memory_space<smem>>) -> (i32, i32) {
    %c0_i32 = arith.constant 0 : i32
    %c0_i32_0 = arith.constant 0 : i32
    %c0_i32_1 = arith.constant 0 : i32
    return %c0_i32, %c0_i32_0 : i32, i32
  }
  func.func @transform_2(%arg0: i32, %arg1: memref<4xi32, #tpu.memory_space<smem>>) -> (i32, i32) {
    %c0_i32 = arith.constant 0 : i32
    %c0_i32_0 = arith.constant 0 : i32
    %c0_i32_1 = arith.constant 0 : i32
    return %c0_i32, %c0_i32_0 : i32, i32
  }
}

module attributes {stable_mosaic.version = 11 : i64} {
  func.func @_metric_kernel(%arg0: i32, %arg1: memref<12xi32, #tpu.memory_space<smem>>, %arg2: memref<32x128xf32, #tpu.memory_space<vmem>>, %arg3: memref<1x2xf32, #tpu.memory_space<vmem>>, %arg4: memref<12x128xf32, #tpu.memory_space<vmem>>, %arg5: memref<12x12xf32, #tpu.memory_space<vmem>>, %arg6: memref<12x12xf32, #tpu.memory_space<vmem>>, %arg7: memref<12x12xf32, #tpu.memory_space<vmem>>, %arg8: memref<12x12xf32, #tpu.memory_space<vmem>>, %arg9: memref<12x12xf32, #tpu.memory_space<vmem>>) attributes {dimension_semantics = [#tpu.dimension_semantics<arbitrary>], iteration_bounds = array<i64: 1>, scalar_prefetch = 1 : i64, scratch_operands = 6 : i64, tpu.core_type = #tpu.core_type<tc>, window_params = [{pipeline_mode = #tpu.pipeline_mode<synchronous>, transform_indices = @transform_0, window_bounds = array<i64: 32, 128>}, {pipeline_mode = #tpu.pipeline_mode<synchronous>, transform_indices = @transform_1, window_bounds = array<i64: 1, 2>}]} {
    %c0_i32 = arith.constant 0 : i32
    %0 = arith.index_cast %c0_i32 : i32 to index
    %1 = memref.load %arg1[%0] : memref<12xi32, #tpu.memory_space<smem>>
    %2 = arith.index_cast %1 : i32 to index
    %c0 = arith.constant 0 : index
    %3 = vector.load %arg2[%2, %c0] : memref<32x128xf32, #tpu.memory_space<vmem>>, vector<1x128xf32>
    %4 = arith.index_cast %c0_i32 : i32 to index
    %c0_0 = arith.constant 0 : index
    %5 = vector.load %arg4[%4, %c0_0] : memref<12x128xf32, #tpu.memory_space<vmem>>, vector<1x128xf32>
    tpu.vector_store %arg4[%4, %c0_0], %3 {strides = array<i32>} : memref<12x128xf32, #tpu.memory_space<vmem>>, vector<1x128xf32>,
    %c1_i32 = arith.constant 1 : i32
    %6 = arith.index_cast %c1_i32 : i32 to index
    %7 = memref.load %arg1[%6] : memref<12xi32, #tpu.memory_space<smem>>
    %8 = arith.index_cast %7 : i32 to index
    %c0_1 = arith.constant 0 : index
    %9 = vector.load %arg2[%8, %c0_1] : memref<32x128xf32, #tpu.memory_space<vmem>>, vector<1x128xf32>
    %10 = arith.index_cast %c1_i32 : i32 to index
    %c0_2 = arith.constant 0 : index
    %11 = vector.load %arg4[%10, %c0_2] : memref<12x128xf32, #tpu.memory_space<vmem>>, vector<1x128xf32>
    tpu.vector_store %arg4[%10, %c0_2], %9 {strides = array<i32>} : memref<12x128xf32, #tpu.memory_space<vmem>>, vector<1x128xf32>,
    %c2_i32 = arith.constant 2 : i32
    %12 = arith.index_cast %c2_i32 : i32 to index
    %13 = memref.load %arg1[%12] : memref<12xi32, #tpu.memory_space<smem>>
    %14 = arith.index_cast %13 : i32 to index
    %c0_3 = arith.constant 0 : index
    %15 = vector.load %arg2[%14, %c0_3] : memref<32x128xf32, #tpu.memory_space<vmem>>, vector<1x128xf32>
    %16 = arith.index_cast %c2_i32 : i32 to index
    %c0_4 = arith.constant 0 : index
    %17 = vector.load %arg4[%16, %c0_4] : memref<12x128xf32, #tpu.memory_space<vmem>>, vector<1x128xf32>
    tpu.vector_store %arg4[%16, %c0_4], %15 {strides = array<i32>} : memref<12x128xf32, #tpu.memory_space<vmem>>, vector<1x128xf32>,
    %c3_i32 = arith.constant 3 : i32
    %18 = arith.index_cast %c3_i32 : i32 to index
    %19 = memref.load %arg1[%18] : memref<12xi32, #tpu.memory_space<smem>>
    %20 = arith.index_cast %19 : i32 to index
    %c0_5 = arith.constant 0 : index
    %21 = vector.load %arg2[%20, %c0_5] : memref<32x128xf32, #tpu.memory_space<vmem>>, vector<1x128xf32>
    %22 = arith.index_cast %c3_i32 : i32 to index
    %c0_6 = arith.constant 0 : index
    %23 = vector.load %arg4[%22, %c0_6] : memref<12x128xf32, #tpu.memory_space<vmem>>, vector<1x128xf32>
    tpu.vector_store %arg4[%22, %c0_6], %21 {strides = array<i32>} : memref<12x128xf32, #tpu.memory_space<vmem>>, vector<1x128xf32>,
    %c4_i32 = arith.constant 4 : i32
    %24 = arith.index_cast %c4_i32 : i32 to index
    %25 = memref.load %arg1[%24] : memref<12xi32, #tpu.memory_space<smem>>
    %26 = arith.index_cast %25 : i32 to index
    %c0_7 = arith.constant 0 : index
    %27 = vector.load %arg2[%26, %c0_7] : memref<32x128xf32, #tpu.memory_space<vmem>>, vector<1x128xf32>
    %28 = arith.index_cast %c4_i32 : i32 to index
    %c0_8 = arith.constant 0 : index
    %29 = vector.load %arg4[%28, %c0_8] : memref<12x128xf32, #tpu.memory_space<vmem>>, vector<1x128xf32>
    tpu.vector_store %arg4[%28, %c0_8], %27 {strides = array<i32>} : memref<12x128xf32, #tpu.memory_space<vmem>>, vector<1x128xf32>,
    %c5_i32 = arith.constant 5 : i32
    %30 = arith.index_cast %c5_i32 : i32 to index
    %31 = memref.load %arg1[%30] : memref<12xi32, #tpu.memory_space<smem>>
    %32 = arith.index_cast %31 : i32 to index
    %c0_9 = arith.constant 0 : index
    %33 = vector.load %arg2[%32, %c0_9] : memref<32x128xf32, #tpu.memory_space<vmem>>, vector<1x128xf32>
    %34 = arith.index_cast %c5_i32 : i32 to index
    %c0_10 = arith.constant 0 : index
    %35 = vector.load %arg4[%34, %c0_10] : memref<12x128xf32, #tpu.memory_space<vmem>>, vector<1x128xf32>
    tpu.vector_store %arg4[%34, %c0_10], %33 {strides = array<i32>} : memref<12x128xf32, #tpu.memory_space<vmem>>, vector<1x128xf32>,
    %c6_i32 = arith.constant 6 : i32
    %36 = arith.index_cast %c6_i32 : i32 to index
    %37 = memref.load %arg1[%36] : memref<12xi32, #tpu.memory_space<smem>>
    %38 = arith.index_cast %37 : i32 to index
    %c0_11 = arith.constant 0 : index
    %39 = vector.load %arg2[%38, %c0_11] : memref<32x128xf32, #tpu.memory_space<vmem>>, vector<1x128xf32>
    %40 = arith.index_cast %c6_i32 : i32 to index
    %c0_12 = arith.constant 0 : index
    %41 = vector.load %arg4[%40, %c0_12] : memref<12x128xf32, #tpu.memory_space<vmem>>, vector<1x128xf32>
    tpu.vector_store %arg4[%40, %c0_12], %39 {strides = array<i32>} : memref<12x128xf32, #tpu.memory_space<vmem>>, vector<1x128xf32>,
    %c7_i32 = arith.constant 7 : i32
    %42 = arith.index_cast %c7_i32 : i32 to index
    %43 = memref.load %arg1[%42] : memref<12xi32, #tpu.memory_space<smem>>
    %44 = arith.index_cast %43 : i32 to index
    %c0_13 = arith.constant 0 : index
    %45 = vector.load %arg2[%44, %c0_13] : memref<32x128xf32, #tpu.memory_space<vmem>>, vector<1x128xf32>
    %46 = arith.index_cast %c7_i32 : i32 to index
    %c0_14 = arith.constant 0 : index
    %47 = vector.load %arg4[%46, %c0_14] : memref<12x128xf32, #tpu.memory_space<vmem>>, vector<1x128xf32>
    tpu.vector_store %arg4[%46, %c0_14], %45 {strides = array<i32>} : memref<12x128xf32, #tpu.memory_space<vmem>>, vector<1x128xf32>,
    %c8_i32 = arith.constant 8 : i32
    %48 = arith.index_cast %c8_i32 : i32 to index
    %49 = memref.load %arg1[%48] : memref<12xi32, #tpu.memory_space<smem>>
    %50 = arith.index_cast %49 : i32 to index
    %c0_15 = arith.constant 0 : index
    %51 = vector.load %arg2[%50, %c0_15] : memref<32x128xf32, #tpu.memory_space<vmem>>, vector<1x128xf32>
    %52 = arith.index_cast %c8_i32 : i32 to index
    %c0_16 = arith.constant 0 : index
    %53 = vector.load %arg4[%52, %c0_16] : memref<12x128xf32, #tpu.memory_space<vmem>>, vector<1x128xf32>
    tpu.vector_store %arg4[%52, %c0_16], %51 {strides = array<i32>} : memref<12x128xf32, #tpu.memory_space<vmem>>, vector<1x128xf32>,
    %c9_i32 = arith.constant 9 : i32
    %54 = arith.index_cast %c9_i32 : i32 to index
    %55 = memref.load %arg1[%54] : memref<12xi32, #tpu.memory_space<smem>>
    %56 = arith.index_cast %55 : i32 to index
    %c0_17 = arith.constant 0 : index
    %57 = vector.load %arg2[%56, %c0_17] : memref<32x128xf32, #tpu.memory_space<vmem>>, vector<1x128xf32>
    %58 = arith.index_cast %c9_i32 : i32 to index
    %c0_18 = arith.constant 0 : index
    %59 = vector.load %arg4[%58, %c0_18] : memref<12x128xf32, #tpu.memory_space<vmem>>, vector<1x128xf32>
    tpu.vector_store %arg4[%58, %c0_18], %57 {strides = array<i32>} : memref<12x128xf32, #tpu.memory_space<vmem>>, vector<1x128xf32>,
    %c10_i32 = arith.constant 10 : i32
    %60 = arith.index_cast %c10_i32 : i32 to index
    %61 = memref.load %arg1[%60] : memref<12xi32, #tpu.memory_space<smem>>
    %62 = arith.index_cast %61 : i32 to index
    %c0_19 = arith.constant 0 : index
    %63 = vector.load %arg2[%62, %c0_19] : memref<32x128xf32, #tpu.memory_space<vmem>>, vector<1x128xf32>
    %64 = arith.index_cast %c10_i32 : i32 to index
    %c0_20 = arith.constant 0 : index
    %65 = vector.load %arg4[%64, %c0_20] : memref<12x128xf32, #tpu.memory_space<vmem>>, vector<1x128xf32>
    tpu.vector_store %arg4[%64, %c0_20], %63 {strides = array<i32>} : memref<12x128xf32, #tpu.memory_space<vmem>>, vector<1x128xf32>,
    %c11_i32 = arith.constant 11 : i32
    %66 = arith.index_cast %c11_i32 : i32 to index
    %67 = memref.load %arg1[%66] : memref<12xi32, #tpu.memory_space<smem>>
    %68 = arith.index_cast %67 : i32 to index
    %c0_21 = arith.constant 0 : index
    %69 = vector.load %arg2[%68, %c0_21] : memref<32x128xf32, #tpu.memory_space<vmem>>, vector<1x128xf32>
    %70 = arith.index_cast %c11_i32 : i32 to index
    %c0_22 = arith.constant 0 : index
    %71 = vector.load %arg4[%70, %c0_22] : memref<12x128xf32, #tpu.memory_space<vmem>>, vector<1x128xf32>
    tpu.vector_store %arg4[%70, %c0_22], %69 {strides = array<i32>} : memref<12x128xf32, #tpu.memory_space<vmem>>, vector<1x128xf32>,
    %c12_i32 = arith.constant 12 : i32
    %c0_23 = arith.constant 0 : index
    %c0_24 = arith.constant 0 : index
    %72 = vector.load %arg4[%c0_23, %c0_24] : memref<12x128xf32, #tpu.memory_space<vmem>>, vector<12x128xf32>
    %73 = arith.mulf %72, %72 : vector<12x128xf32>
    %cst = arith.constant dense<0.000000e+00> : vector<12xf32>
    %74 = vector.multi_reduction <add>, %73, %cst [1] : vector<12x128xf32> to vector<12xf32>
    %75 = vector.shape_cast %74 : vector<12xf32> to vector<12x1xf32>
    %cst_25 = arith.constant 1.000000e-24 : f32
    %76 = vector.broadcast %cst_25 : f32 to vector<12x1xf32>
    %77 = arith.maximumf %75, %76 : vector<12x1xf32>
    %78 = math.rsqrt %77 : vector<12x1xf32>
    %79 = vector.broadcast %78 : vector<12x1xf32> to vector<12x128xf32>
    %80 = arith.mulf %72, %79 : vector<12x128xf32>
    %cst_26 = arith.constant dense<0.000000e+00> : vector<12x12xf32>
    %81 = tpu.matmul %80, %80, %cst_26 {dimension_numbers = #tpu.dot_dimension_numbers<[1], [1], [0], [0], [0, 0, 1, 0], [], []>} : vector<12x128xf32>, vector<12x128xf32>, vector<12x12xf32> -> vector<12x12xf32>
    %cst_27 = arith.constant 2.000000e+00 : f32
    %82 = vector.broadcast %cst_27 : f32 to vector<12x12xf32>
    %83 = arith.mulf %82, %81 : vector<12x12xf32>
    %cst_28 = arith.constant 2.000000e+00 : f32
    %84 = vector.broadcast %cst_28 : f32 to vector<12x12xf32>
    %85 = arith.subf %84, %83 : vector<12x12xf32>
    %cst_29 = arith.constant 0.000000e+00 : f32
    %86 = vector.broadcast %cst_29 : f32 to vector<12x12xf32>
    %87 = arith.maximumf %85, %86 : vector<12x12xf32>
    %88 = math.sqrt %87 : vector<12x12xf32>
    %89 = tpu.iota {dimensions = array<i32: 0>} : vector<12x12xi32>
    %90 = tpu.iota {dimensions = array<i32: 1>} : vector<12x12xi32>
    %c6_i32_30 = arith.constant 6 : i32
    %91 = vector.broadcast %c6_i32_30 : i32 to vector<12x12xi32>
    %92 = arith.cmpi slt, %89, %91 : vector<12x12xi32>
    %c6_i32_31 = arith.constant 6 : i32
    %93 = vector.broadcast %c6_i32_31 : i32 to vector<12x12xi32>
    %94 = arith.cmpi slt, %90, %93 : vector<12x12xi32>
    %95 = arith.xori %92, %94 : vector<12x12xi1>
    %cst_32 = arith.constant dense<true> : vector<12x12xi1>
    %96 = arith.xori %95, %cst_32 : vector<12x12xi1>
    %97 = arith.cmpi eq, %89, %90 : vector<12x12xi32>
    %cst_33 = arith.constant dense<true> : vector<12x12xi1>
    %98 = arith.xori %97, %cst_33 : vector<12x12xi1>
    %99 = arith.andi %96, %98 : vector<12x12xi1>
    %cst_34 = arith.constant dense<true> : vector<12x12xi1>
    %100 = arith.xori %96, %cst_34 : vector<12x12xi1>
    %cst_35 = arith.constant -1.000000e+30 : f32
    %101 = vector.broadcast %cst_35 : f32 to vector<12x12xf32>
    %102 = arith.select %100, %81, %101 : vector<12x12xi1>, vector<12x12xf32>
    %cst_36 = arith.constant dense<0xFF800000> : vector<12xf32>
    %103 = vector.multi_reduction <maximumf>, %102, %cst_36 [0] : vector<12x12xf32> to vector<12xf32>
    %104 = vector.shape_cast %103 : vector<12xf32> to vector<1x12xf32>
    %cst_37 = arith.constant 1.000000e+30 : f32
    %105 = vector.broadcast %cst_37 : f32 to vector<12x12xf32>
    %106 = arith.select %99, %81, %105 : vector<12x12xi1>, vector<12x12xf32>
    %cst_38 = arith.constant dense<0x7F800000> : vector<12xf32>
    %107 = vector.multi_reduction <minimumf>, %106, %cst_38 [0] : vector<12x12xf32> to vector<12xf32>
    %108 = vector.shape_cast %107 : vector<12xf32> to vector<1x12xf32>
    %cst_39 = arith.constant 1.000000e-01 : f32
    %109 = vector.broadcast %cst_39 : f32 to vector<12x12xf32>
    %110 = arith.subf %81, %109 : vector<12x12xf32>
    %111 = vector.broadcast %104 : vector<1x12xf32> to vector<12x12xf32>
    %112 = arith.cmpf olt, %110, %111 : vector<12x12xf32>
    %113 = arith.andi %99, %112 : vector<12x12xi1>
    %cst_40 = arith.constant 1.000000e-01 : f32
    %114 = vector.broadcast %cst_40 : f32 to vector<12x12xf32>
    %115 = arith.addf %81, %114 : vector<12x12xf32>
    %116 = vector.broadcast %108 : vector<1x12xf32> to vector<12x12xf32>
    %117 = arith.cmpf ogt, %115, %116 : vector<12x12xf32>
    %118 = arith.andi %100, %117 : vector<12x12xi1>
    %c0_41 = arith.constant 0 : index
    %c0_42 = arith.constant 0 : index
    %119 = vector.load %arg5[%c0_41, %c0_42] : memref<12x12xf32, #tpu.memory_space<vmem>>, vector<12x12xf32>
    tpu.vector_store %arg5[%c0_41, %c0_42], %88 {strides = array<i32>} : memref<12x12xf32, #tpu.memory_space<vmem>>, vector<12x12xf32>,
    %120 = arith.extui %113 : vector<12x12xi1> to vector<12x12xi32>
    %121 = arith.sitofp %120 : vector<12x12xi32> to vector<12x12xf32>
    %c0_43 = arith.constant 0 : index
    %c0_44 = arith.constant 0 : index
    %122 = vector.load %arg6[%c0_43, %c0_44] : memref<12x12xf32, #tpu.memory_space<vmem>>, vector<12x12xf32>
    tpu.vector_store %arg6[%c0_43, %c0_44], %121 {strides = array<i32>} : memref<12x12xf32, #tpu.memory_space<vmem>>, vector<12x12xf32>,
    %123 = arith.extui %118 : vector<12x12xi1> to vector<12x12xi32>
    %124 = arith.sitofp %123 : vector<12x12xi32> to vector<12x12xf32>
    %c0_45 = arith.constant 0 : index
    %c0_46 = arith.constant 0 : index
    %125 = vector.load %arg7[%c0_45, %c0_46] : memref<12x12xf32, #tpu.memory_space<vmem>>, vector<12x12xf32>
    tpu.vector_store %arg7[%c0_45, %c0_46], %124 {strides = array<i32>} : memref<12x12xf32, #tpu.memory_space<vmem>>, vector<12x12xf32>,
    %cst_47 = arith.constant 0.000000e+00 : f32
    %126 = vector.broadcast %cst_47 : f32 to vector<12x12xf32>
    %c0_48 = arith.constant 0 : index
    %c0_49 = arith.constant 0 : index
    %127 = vector.load %arg8[%c0_48, %c0_49] : memref<12x12xf32, #tpu.memory_space<vmem>>, vector<12x12xf32>
    tpu.vector_store %arg8[%c0_48, %c0_49], %126 {strides = array<i32>} : memref<12x12xf32, #tpu.memory_space<vmem>>, vector<12x12xf32>,
    %cst_50 = arith.constant 0.000000e+00 : f32
    %128 = vector.broadcast %cst_50 : f32 to vector<12x12xf32>
    %c0_51 = arith.constant 0 : index
    %c0_52 = arith.constant 0 : index
    %129 = vector.load %arg9[%c0_51, %c0_52] : memref<12x12xf32, #tpu.memory_space<vmem>>, vector<12x12xf32>
    tpu.vector_store %arg9[%c0_51, %c0_52], %128 {strides = array<i32>} : memref<12x12xf32, #tpu.memory_space<vmem>>, vector<12x12xf32>,
    %cst_53 = arith.constant 5.000000e-02 : f32
    %c0_i32_54 = arith.constant 0 : i32
    %130 = arith.index_cast %c0_i32_54 : i32 to index
    %c0_55 = arith.constant 0 : index
    %131 = vector.load %arg5[%130, %c0_55] : memref<12x12xf32, #tpu.memory_space<vmem>>, vector<1x12xf32>
    %132 = arith.index_cast %c0_i32_54 : i32 to index
    %c0_56 = arith.constant 0 : index
    %133 = vector.load %arg6[%132, %c0_56] : memref<12x12xf32, #tpu.memory_space<vmem>>, vector<1x12xf32>
    %c0_57 = arith.constant 0 : index
    %c0_58 = arith.constant 0 : index
    %134 = vector.load %arg5[%c0_57, %c0_58] : memref<12x12xf32, #tpu.memory_space<vmem>>, vector<12x12xf32>
    %c0_59 = arith.constant 0 : index
    %c0_60 = arith.constant 0 : index
    %135 = vector.load %arg7[%c0_59, %c0_60] : memref<12x12xf32, #tpu.memory_space<vmem>>, vector<12x12xf32>
    %136 = vector.broadcast %131 : vector<1x12xf32> to vector<12x12xf32>
    %137 = arith.subf %136, %134 : vector<12x12xf32>
    %138 = vector.broadcast %cst_53 : f32 to vector<12x12xf32>
    %139 = arith.addf %137, %138 : vector<12x12xf32>
    %140 = vector.broadcast %133 : vector<1x12xf32> to vector<12x12xf32>
    %141 = arith.mulf %140, %135 : vector<12x12xf32>
    %cst_61 = arith.constant 0.000000e+00 : f32
    %142 = vector.broadcast %cst_61 : f32 to vector<12x12xf32>
    %143 = arith.cmpf ogt, %141, %142 : vector<12x12xf32>
    %cst_62 = arith.constant 0.000000e+00 : f32
    %144 = vector.broadcast %cst_62 : f32 to vector<12x12xf32>
    %145 = arith.cmpf ogt, %139, %144 : vector<12x12xf32>
    %146 = arith.andi %143, %145 : vector<12x12xi1>
    %c0_63 = arith.constant 0 : index
    %c0_64 = arith.constant 0 : index
    %147 = vector.load %arg8[%c0_63, %c0_64] : memref<12x12xf32, #tpu.memory_space<vmem>>, vector<12x12xf32>
    %cst_65 = arith.constant 0.000000e+00 : f32
    %148 = vector.broadcast %cst_65 : f32 to vector<12x12xf32>
    %149 = arith.select %146, %139, %148 : vector<12x12xi1>, vector<12x12xf32>
    %150 = arith.addf %147, %149 : vector<12x12xf32>
    %c0_66 = arith.constant 0 : index
    %c0_67 = arith.constant 0 : index
    %151 = vector.load %arg8[%c0_66, %c0_67] : memref<12x12xf32, #tpu.memory_space<vmem>>, vector<12x12xf32>
    tpu.vector_store %arg8[%c0_66, %c0_67], %150 {strides = array<i32>} : memref<12x12xf32, #tpu.memory_space<vmem>>, vector<12x12xf32>,
    %c0_68 = arith.constant 0 : index
    %c0_69 = arith.constant 0 : index
    %152 = vector.load %arg9[%c0_68, %c0_69] : memref<12x12xf32, #tpu.memory_space<vmem>>, vector<12x12xf32>
    %153 = arith.extui %146 : vector<12x12xi1> to vector<12x12xi32>
    %154 = arith.sitofp %153 : vector<12x12xi32> to vector<12x12xf32>
    %155 = arith.addf %152, %154 : vector<12x12xf32>
    %c0_70 = arith.constant 0 : index
    %c0_71 = arith.constant 0 : index
    %156 = vector.load %arg9[%c0_70, %c0_71] : memref<12x12xf32, #tpu.memory_space<vmem>>, vector<12x12xf32>
    tpu.vector_store %arg9[%c0_70, %c0_71], %155 {strides = array<i32>} : memref<12x12xf32, #tpu.memory_space<vmem>>, vector<12x12xf32>,
    %c1_i32_72 = arith.constant 1 : i32
    %157 = arith.index_cast %c1_i32_72 : i32 to index
    %c0_73 = arith.constant 0 : index
    %158 = vector.load %arg5[%157, %c0_73] : memref<12x12xf32, #tpu.memory_space<vmem>>, vector<1x12xf32>
    %159 = arith.index_cast %c1_i32_72 : i32 to index
    %c0_74 = arith.constant 0 : index
    %160 = vector.load %arg6[%159, %c0_74] : memref<12x12xf32, #tpu.memory_space<vmem>>, vector<1x12xf32>
    %c0_75 = arith.constant 0 : index
    %c0_76 = arith.constant 0 : index
    %161 = vector.load %arg5[%c0_75, %c0_76] : memref<12x12xf32, #tpu.memory_space<vmem>>, vector<12x12xf32>
    %c0_77 = arith.constant 0 : index
    %c0_78 = arith.constant 0 : index
    %162 = vector.load %arg7[%c0_77, %c0_78] : memref<12x12xf32, #tpu.memory_space<vmem>>, vector<12x12xf32>
    %163 = vector.broadcast %158 : vector<1x12xf32> to vector<12x12xf32>
    %164 = arith.subf %163, %161 : vector<12x12xf32>
    %165 = vector.broadcast %cst_53 : f32 to vector<12x12xf32>
    %166 = arith.addf %164, %165 : vector<12x12xf32>
    %167 = vector.broadcast %160 : vector<1x12xf32> to vector<12x12xf32>
    %168 = arith.mulf %167, %162 : vector<12x12xf32>
    %cst_79 = arith.constant 0.000000e+00 : f32
    %169 = vector.broadcast %cst_79 : f32 to vector<12x12xf32>
    %170 = arith.cmpf ogt, %168, %169 : vector<12x12xf32>
    %cst_80 = arith.constant 0.000000e+00 : f32
    %171 = vector.broadcast %cst_80 : f32 to vector<12x12xf32>
    %172 = arith.cmpf ogt, %166, %171 : vector<12x12xf32>
    %173 = arith.andi %170, %172 : vector<12x12xi1>
    %c0_81 = arith.constant 0 : index
    %c0_82 = arith.constant 0 : index
    %174 = vector.load %arg8[%c0_81, %c0_82] : memref<12x12xf32, #tpu.memory_space<vmem>>, vector<12x12xf32>
    %cst_83 = arith.constant 0.000000e+00 : f32
    %175 = vector.broadcast %cst_83 : f32 to vector<12x12xf32>
    %176 = arith.select %173, %166, %175 : vector<12x12xi1>, vector<12x12xf32>
    %177 = arith.addf %174, %176 : vector<12x12xf32>
    %c0_84 = arith.constant 0 : index
    %c0_85 = arith.constant 0 : index
    %178 = vector.load %arg8[%c0_84, %c0_85] : memref<12x12xf32, #tpu.memory_space<vmem>>, vector<12x12xf32>
    tpu.vector_store %arg8[%c0_84, %c0_85], %177 {strides = array<i32>} : memref<12x12xf32, #tpu.memory_space<vmem>>, vector<12x12xf32>,
    %c0_86 = arith.constant 0 : index
    %c0_87 = arith.constant 0 : index
    %179 = vector.load %arg9[%c0_86, %c0_87] : memref<12x12xf32, #tpu.memory_space<vmem>>, vector<12x12xf32>
    %180 = arith.extui %173 : vector<12x12xi1> to vector<12x12xi32>
    %181 = arith.sitofp %180 : vector<12x12xi32> to vector<12x12xf32>
    %182 = arith.addf %179, %181 : vector<12x12xf32>
    %c0_88 = arith.constant 0 : index
    %c0_89 = arith.constant 0 : index
    %183 = vector.load %arg9[%c0_88, %c0_89] : memref<12x12xf32, #tpu.memory_space<vmem>>, vector<12x12xf32>
    tpu.vector_store %arg9[%c0_88, %c0_89], %182 {strides = array<i32>} : memref<12x12xf32, #tpu.memory_space<vmem>>, vector<12x12xf32>,
    %c2_i32_90 = arith.constant 2 : i32
    %184 = arith.index_cast %c2_i32_90 : i32 to index
    %c0_91 = arith.constant 0 : index
    %185 = vector.load %arg5[%184, %c0_91] : memref<12x12xf32, #tpu.memory_space<vmem>>, vector<1x12xf32>
    %186 = arith.index_cast %c2_i32_90 : i32 to index
    %c0_92 = arith.constant 0 : index
    %187 = vector.load %arg6[%186, %c0_92] : memref<12x12xf32, #tpu.memory_space<vmem>>, vector<1x12xf32>
    %c0_93 = arith.constant 0 : index
    %c0_94 = arith.constant 0 : index
    %188 = vector.load %arg5[%c0_93, %c0_94] : memref<12x12xf32, #tpu.memory_space<vmem>>, vector<12x12xf32>
    %c0_95 = arith.constant 0 : index
    %c0_96 = arith.constant 0 : index
    %189 = vector.load %arg7[%c0_95, %c0_96] : memref<12x12xf32, #tpu.memory_space<vmem>>, vector<12x12xf32>
    %190 = vector.broadcast %185 : vector<1x12xf32> to vector<12x12xf32>
    %191 = arith.subf %190, %188 : vector<12x12xf32>
    %192 = vector.broadcast %cst_53 : f32 to vector<12x12xf32>
    %193 = arith.addf %191, %192 : vector<12x12xf32>
    %194 = vector.broadcast %187 : vector<1x12xf32> to vector<12x12xf32>
    %195 = arith.mulf %194, %189 : vector<12x12xf32>
    %cst_97 = arith.constant 0.000000e+00 : f32
    %196 = vector.broadcast %cst_97 : f32 to vector<12x12xf32>
    %197 = arith.cmpf ogt, %195, %196 : vector<12x12xf32>
    %cst_98 = arith.constant 0.000000e+00 : f32
    %198 = vector.broadcast %cst_98 : f32 to vector<12x12xf32>
    %199 = arith.cmpf ogt, %193, %198 : vector<12x12xf32>
    %200 = arith.andi %197, %199 : vector<12x12xi1>
    %c0_99 = arith.constant 0 : index
    %c0_100 = arith.constant 0 : index
    %201 = vector.load %arg8[%c0_99, %c0_100] : memref<12x12xf32, #tpu.memory_space<vmem>>, vector<12x12xf32>
    %cst_101 = arith.constant 0.000000e+00 : f32
    %202 = vector.broadcast %cst_101 : f32 to vector<12x12xf32>
    %203 = arith.select %200, %193, %202 : vector<12x12xi1>, vector<12x12xf32>
    %204 = arith.addf %201, %203 : vector<12x12xf32>
    %c0_102 = arith.constant 0 : index
    %c0_103 = arith.constant 0 : index
    %205 = vector.load %arg8[%c0_102, %c0_103] : memref<12x12xf32, #tpu.memory_space<vmem>>, vector<12x12xf32>
    tpu.vector_store %arg8[%c0_102, %c0_103], %204 {strides = array<i32>} : memref<12x12xf32, #tpu.memory_space<vmem>>, vector<12x12xf32>,
    %c0_104 = arith.constant 0 : index
    %c0_105 = arith.constant 0 : index
    %206 = vector.load %arg9[%c0_104, %c0_105] : memref<12x12xf32, #tpu.memory_space<vmem>>, vector<12x12xf32>
    %207 = arith.extui %200 : vector<12x12xi1> to vector<12x12xi32>
    %208 = arith.sitofp %207 : vector<12x12xi32> to vector<12x12xf32>
    %209 = arith.addf %206, %208 : vector<12x12xf32>
    %c0_106 = arith.constant 0 : index
    %c0_107 = arith.constant 0 : index
    %210 = vector.load %arg9[%c0_106, %c0_107] : memref<12x12xf32, #tpu.memory_space<vmem>>, vector<12x12xf32>
    tpu.vector_store %arg9[%c0_106, %c0_107], %209 {strides = array<i32>} : memref<12x12xf32, #tpu.memory_space<vmem>>, vector<12x12xf32>,
    %c3_i32_108 = arith.constant 3 : i32
    %211 = arith.index_cast %c3_i32_108 : i32 to index
    %c0_109 = arith.constant 0 : index
    %212 = vector.load %arg5[%211, %c0_109] : memref<12x12xf32, #tpu.memory_space<vmem>>, vector<1x12xf32>
    %213 = arith.index_cast %c3_i32_108 : i32 to index
    %c0_110 = arith.constant 0 : index
    %214 = vector.load %arg6[%213, %c0_110] : memref<12x12xf32, #tpu.memory_space<vmem>>, vector<1x12xf32>
    %c0_111 = arith.constant 0 : index
    %c0_112 = arith.constant 0 : index
    %215 = vector.load %arg5[%c0_111, %c0_112] : memref<12x12xf32, #tpu.memory_space<vmem>>, vector<12x12xf32>
    %c0_113 = arith.constant 0 : index
    %c0_114 = arith.constant 0 : index
    %216 = vector.load %arg7[%c0_113, %c0_114] : memref<12x12xf32, #tpu.memory_space<vmem>>, vector<12x12xf32>
    %217 = vector.broadcast %212 : vector<1x12xf32> to vector<12x12xf32>
    %218 = arith.subf %217, %215 : vector<12x12xf32>
    %219 = vector.broadcast %cst_53 : f32 to vector<12x12xf32>
    %220 = arith.addf %218, %219 : vector<12x12xf32>
    %221 = vector.broadcast %214 : vector<1x12xf32> to vector<12x12xf32>
    %222 = arith.mulf %221, %216 : vector<12x12xf32>
    %cst_115 = arith.constant 0.000000e+00 : f32
    %223 = vector.broadcast %cst_115 : f32 to vector<12x12xf32>
    %224 = arith.cmpf ogt, %222, %223 : vector<12x12xf32>
    %cst_116 = arith.constant 0.000000e+00 : f32
    %225 = vector.broadcast %cst_116 : f32 to vector<12x12xf32>
    %226 = arith.cmpf ogt, %220, %225 : vector<12x12xf32>
    %227 = arith.andi %224, %226 : vector<12x12xi1>
    %c0_117 = arith.constant 0 : index
    %c0_118 = arith.constant 0 : index
    %228 = vector.load %arg8[%c0_117, %c0_118] : memref<12x12xf32, #tpu.memory_space<vmem>>, vector<12x12xf32>
    %cst_119 = arith.constant 0.000000e+00 : f32
    %229 = vector.broadcast %cst_119 : f32 to vector<12x12xf32>
    %230 = arith.select %227, %220, %229 : vector<12x12xi1>, vector<12x12xf32>
    %231 = arith.addf %228, %230 : vector<12x12xf32>
    %c0_120 = arith.constant 0 : index
    %c0_121 = arith.constant 0 : index
    %232 = vector.load %arg8[%c0_120, %c0_121] : memref<12x12xf32, #tpu.memory_space<vmem>>, vector<12x12xf32>
    tpu.vector_store %arg8[%c0_120, %c0_121], %231 {strides = array<i32>} : memref<12x12xf32, #tpu.memory_space<vmem>>, vector<12x12xf32>,
    %c0_122 = arith.constant 0 : index
    %c0_123 = arith.constant 0 : index
    %233 = vector.load %arg9[%c0_122, %c0_123] : memref<12x12xf32, #tpu.memory_space<vmem>>, vector<12x12xf32>
    %234 = arith.extui %227 : vector<12x12xi1> to vector<12x12xi32>
    %235 = arith.sitofp %234 : vector<12x12xi32> to vector<12x12xf32>
    %236 = arith.addf %233, %235 : vector<12x12xf32>
    %c0_124 = arith.constant 0 : index
    %c0_125 = arith.constant 0 : index
    %237 = vector.load %arg9[%c0_124, %c0_125] : memref<12x12xf32, #tpu.memory_space<vmem>>, vector<12x12xf32>
    tpu.vector_store %arg9[%c0_124, %c0_125], %236 {strides = array<i32>} : memref<12x12xf32, #tpu.memory_space<vmem>>, vector<12x12xf32>,
    %c4_i32_126 = arith.constant 4 : i32
    %238 = arith.index_cast %c4_i32_126 : i32 to index
    %c0_127 = arith.constant 0 : index
    %239 = vector.load %arg5[%238, %c0_127] : memref<12x12xf32, #tpu.memory_space<vmem>>, vector<1x12xf32>
    %240 = arith.index_cast %c4_i32_126 : i32 to index
    %c0_128 = arith.constant 0 : index
    %241 = vector.load %arg6[%240, %c0_128] : memref<12x12xf32, #tpu.memory_space<vmem>>, vector<1x12xf32>
    %c0_129 = arith.constant 0 : index
    %c0_130 = arith.constant 0 : index
    %242 = vector.load %arg5[%c0_129, %c0_130] : memref<12x12xf32, #tpu.memory_space<vmem>>, vector<12x12xf32>
    %c0_131 = arith.constant 0 : index
    %c0_132 = arith.constant 0 : index
    %243 = vector.load %arg7[%c0_131, %c0_132] : memref<12x12xf32, #tpu.memory_space<vmem>>, vector<12x12xf32>
    %244 = vector.broadcast %239 : vector<1x12xf32> to vector<12x12xf32>
    %245 = arith.subf %244, %242 : vector<12x12xf32>
    %246 = vector.broadcast %cst_53 : f32 to vector<12x12xf32>
    %247 = arith.addf %245, %246 : vector<12x12xf32>
    %248 = vector.broadcast %241 : vector<1x12xf32> to vector<12x12xf32>
    %249 = arith.mulf %248, %243 : vector<12x12xf32>
    %cst_133 = arith.constant 0.000000e+00 : f32
    %250 = vector.broadcast %cst_133 : f32 to vector<12x12xf32>
    %251 = arith.cmpf ogt, %249, %250 : vector<12x12xf32>
    %cst_134 = arith.constant 0.000000e+00 : f32
    %252 = vector.broadcast %cst_134 : f32 to vector<12x12xf32>
    %253 = arith.cmpf ogt, %247, %252 : vector<12x12xf32>
    %254 = arith.andi %251, %253 : vector<12x12xi1>
    %c0_135 = arith.constant 0 : index
    %c0_136 = arith.constant 0 : index
    %255 = vector.load %arg8[%c0_135, %c0_136] : memref<12x12xf32, #tpu.memory_space<vmem>>, vector<12x12xf32>
    %cst_137 = arith.constant 0.000000e+00 : f32
    %256 = vector.broadcast %cst_137 : f32 to vector<12x12xf32>
    %257 = arith.select %254, %247, %256 : vector<12x12xi1>, vector<12x12xf32>
    %258 = arith.addf %255, %257 : vector<12x12xf32>
    %c0_138 = arith.constant 0 : index
    %c0_139 = arith.constant 0 : index
    %259 = vector.load %arg8[%c0_138, %c0_139] : memref<12x12xf32, #tpu.memory_space<vmem>>, vector<12x12xf32>
    tpu.vector_store %arg8[%c0_138, %c0_139], %258 {strides = array<i32>} : memref<12x12xf32, #tpu.memory_space<vmem>>, vector<12x12xf32>,
    %c0_140 = arith.constant 0 : index
    %c0_141 = arith.constant 0 : index
    %260 = vector.load %arg9[%c0_140, %c0_141] : memref<12x12xf32, #tpu.memory_space<vmem>>, vector<12x12xf32>
    %261 = arith.extui %254 : vector<12x12xi1> to vector<12x12xi32>
    %262 = arith.sitofp %261 : vector<12x12xi32> to vector<12x12xf32>
    %263 = arith.addf %260, %262 : vector<12x12xf32>
    %c0_142 = arith.constant 0 : index
    %c0_143 = arith.constant 0 : index
    %264 = vector.load %arg9[%c0_142, %c0_143] : memref<12x12xf32, #tpu.memory_space<vmem>>, vector<12x12xf32>
    tpu.vector_store %arg9[%c0_142, %c0_143], %263 {strides = array<i32>} : memref<12x12xf32, #tpu.memory_space<vmem>>, vector<12x12xf32>,
    %c5_i32_144 = arith.constant 5 : i32
    %265 = arith.index_cast %c5_i32_144 : i32 to index
    %c0_145 = arith.constant 0 : index
    %266 = vector.load %arg5[%265, %c0_145] : memref<12x12xf32, #tpu.memory_space<vmem>>, vector<1x12xf32>
    %267 = arith.index_cast %c5_i32_144 : i32 to index
    %c0_146 = arith.constant 0 : index
    %268 = vector.load %arg6[%267, %c0_146] : memref<12x12xf32, #tpu.memory_space<vmem>>, vector<1x12xf32>
    %c0_147 = arith.constant 0 : index
    %c0_148 = arith.constant 0 : index
    %269 = vector.load %arg5[%c0_147, %c0_148] : memref<12x12xf32, #tpu.memory_space<vmem>>, vector<12x12xf32>
    %c0_149 = arith.constant 0 : index
    %c0_150 = arith.constant 0 : index
    %270 = vector.load %arg7[%c0_149, %c0_150] : memref<12x12xf32, #tpu.memory_space<vmem>>, vector<12x12xf32>
    %271 = vector.broadcast %266 : vector<1x12xf32> to vector<12x12xf32>
    %272 = arith.subf %271, %269 : vector<12x12xf32>
    %273 = vector.broadcast %cst_53 : f32 to vector<12x12xf32>
    %274 = arith.addf %272, %273 : vector<12x12xf32>
    %275 = vector.broadcast %268 : vector<1x12xf32> to vector<12x12xf32>
    %276 = arith.mulf %275, %270 : vector<12x12xf32>
    %cst_151 = arith.constant 0.000000e+00 : f32
    %277 = vector.broadcast %cst_151 : f32 to vector<12x12xf32>
    %278 = arith.cmpf ogt, %276, %277 : vector<12x12xf32>
    %cst_152 = arith.constant 0.000000e+00 : f32
    %279 = vector.broadcast %cst_152 : f32 to vector<12x12xf32>
    %280 = arith.cmpf ogt, %274, %279 : vector<12x12xf32>
    %281 = arith.andi %278, %280 : vector<12x12xi1>
    %c0_153 = arith.constant 0 : index
    %c0_154 = arith.constant 0 : index
    %282 = vector.load %arg8[%c0_153, %c0_154] : memref<12x12xf32, #tpu.memory_space<vmem>>, vector<12x12xf32>
    %cst_155 = arith.constant 0.000000e+00 : f32
    %283 = vector.broadcast %cst_155 : f32 to vector<12x12xf32>
    %284 = arith.select %281, %274, %283 : vector<12x12xi1>, vector<12x12xf32>
    %285 = arith.addf %282, %284 : vector<12x12xf32>
    %c0_156 = arith.constant 0 : index
    %c0_157 = arith.constant 0 : index
    %286 = vector.load %arg8[%c0_156, %c0_157] : memref<12x12xf32, #tpu.memory_space<vmem>>, vector<12x12xf32>
    tpu.vector_store %arg8[%c0_156, %c0_157], %285 {strides = array<i32>} : memref<12x12xf32, #tpu.memory_space<vmem>>, vector<12x12xf32>,
    %c0_158 = arith.constant 0 : index
    %c0_159 = arith.constant 0 : index
    %287 = vector.load %arg9[%c0_158, %c0_159] : memref<12x12xf32, #tpu.memory_space<vmem>>, vector<12x12xf32>
    %288 = arith.extui %281 : vector<12x12xi1> to vector<12x12xi32>
    %289 = arith.sitofp %288 : vector<12x12xi32> to vector<12x12xf32>
    %290 = arith.addf %287, %289 : vector<12x12xf32>
    %c0_160 = arith.constant 0 : index
    %c0_161 = arith.constant 0 : index
    %291 = vector.load %arg9[%c0_160, %c0_161] : memref<12x12xf32, #tpu.memory_space<vmem>>, vector<12x12xf32>
    tpu.vector_store %arg9[%c0_160, %c0_161], %290 {strides = array<i32>} : memref<12x12xf32, #tpu.memory_space<vmem>>, vector<12x12xf32>,
    %c6_i32_162 = arith.constant 6 : i32
    %292 = arith.index_cast %c6_i32_162 : i32 to index
    %c0_163 = arith.constant 0 : index
    %293 = vector.load %arg5[%292, %c0_163] : memref<12x12xf32, #tpu.memory_space<vmem>>, vector<1x12xf32>
    %294 = arith.index_cast %c6_i32_162 : i32 to index
    %c0_164 = arith.constant 0 : index
    %295 = vector.load %arg6[%294, %c0_164] : memref<12x12xf32, #tpu.memory_space<vmem>>, vector<1x12xf32>
    %c0_165 = arith.constant 0 : index
    %c0_166 = arith.constant 0 : index
    %296 = vector.load %arg5[%c0_165, %c0_166] : memref<12x12xf32, #tpu.memory_space<vmem>>, vector<12x12xf32>
    %c0_167 = arith.constant 0 : index
    %c0_168 = arith.constant 0 : index
    %297 = vector.load %arg7[%c0_167, %c0_168] : memref<12x12xf32, #tpu.memory_space<vmem>>, vector<12x12xf32>
    %298 = vector.broadcast %293 : vector<1x12xf32> to vector<12x12xf32>
    %299 = arith.subf %298, %296 : vector<12x12xf32>
    %300 = vector.broadcast %cst_53 : f32 to vector<12x12xf32>
    %301 = arith.addf %299, %300 : vector<12x12xf32>
    %302 = vector.broadcast %295 : vector<1x12xf32> to vector<12x12xf32>
    %303 = arith.mulf %302, %297 : vector<12x12xf32>
    %cst_169 = arith.constant 0.000000e+00 : f32
    %304 = vector.broadcast %cst_169 : f32 to vector<12x12xf32>
    %305 = arith.cmpf ogt, %303, %304 : vector<12x12xf32>
    %cst_170 = arith.constant 0.000000e+00 : f32
    %306 = vector.broadcast %cst_170 : f32 to vector<12x12xf32>
    %307 = arith.cmpf ogt, %301, %306 : vector<12x12xf32>
    %308 = arith.andi %305, %307 : vector<12x12xi1>
    %c0_171 = arith.constant 0 : index
    %c0_172 = arith.constant 0 : index
    %309 = vector.load %arg8[%c0_171, %c0_172] : memref<12x12xf32, #tpu.memory_space<vmem>>, vector<12x12xf32>
    %cst_173 = arith.constant 0.000000e+00 : f32
    %310 = vector.broadcast %cst_173 : f32 to vector<12x12xf32>
    %311 = arith.select %308, %301, %310 : vector<12x12xi1>, vector<12x12xf32>
    %312 = arith.addf %309, %311 : vector<12x12xf32>
    %c0_174 = arith.constant 0 : index
    %c0_175 = arith.constant 0 : index
    %313 = vector.load %arg8[%c0_174, %c0_175] : memref<12x12xf32, #tpu.memory_space<vmem>>, vector<12x12xf32>
    tpu.vector_store %arg8[%c0_174, %c0_175], %312 {strides = array<i32>} : memref<12x12xf32, #tpu.memory_space<vmem>>, vector<12x12xf32>,
    %c0_176 = arith.constant 0 : index
    %c0_177 = arith.constant 0 : index
    %314 = vector.load %arg9[%c0_176, %c0_177] : memref<12x12xf32, #tpu.memory_space<vmem>>, vector<12x12xf32>
    %315 = arith.extui %308 : vector<12x12xi1> to vector<12x12xi32>
    %316 = arith.sitofp %315 : vector<12x12xi32> to vector<12x12xf32>
    %317 = arith.addf %314, %316 : vector<12x12xf32>
    %c0_178 = arith.constant 0 : index
    %c0_179 = arith.constant 0 : index
    %318 = vector.load %arg9[%c0_178, %c0_179] : memref<12x12xf32, #tpu.memory_space<vmem>>, vector<12x12xf32>
    tpu.vector_store %arg9[%c0_178, %c0_179], %317 {strides = array<i32>} : memref<12x12xf32, #tpu.memory_space<vmem>>, vector<12x12xf32>,
    %c7_i32_180 = arith.constant 7 : i32
    %319 = arith.index_cast %c7_i32_180 : i32 to index
    %c0_181 = arith.constant 0 : index
    %320 = vector.load %arg5[%319, %c0_181] : memref<12x12xf32, #tpu.memory_space<vmem>>, vector<1x12xf32>
    %321 = arith.index_cast %c7_i32_180 : i32 to index
    %c0_182 = arith.constant 0 : index
    %322 = vector.load %arg6[%321, %c0_182] : memref<12x12xf32, #tpu.memory_space<vmem>>, vector<1x12xf32>
    %c0_183 = arith.constant 0 : index
    %c0_184 = arith.constant 0 : index
    %323 = vector.load %arg5[%c0_183, %c0_184] : memref<12x12xf32, #tpu.memory_space<vmem>>, vector<12x12xf32>
    %c0_185 = arith.constant 0 : index
    %c0_186 = arith.constant 0 : index
    %324 = vector.load %arg7[%c0_185, %c0_186] : memref<12x12xf32, #tpu.memory_space<vmem>>, vector<12x12xf32>
    %325 = vector.broadcast %320 : vector<1x12xf32> to vector<12x12xf32>
    %326 = arith.subf %325, %323 : vector<12x12xf32>
    %327 = vector.broadcast %cst_53 : f32 to vector<12x12xf32>
    %328 = arith.addf %326, %327 : vector<12x12xf32>
    %329 = vector.broadcast %322 : vector<1x12xf32> to vector<12x12xf32>
    %330 = arith.mulf %329, %324 : vector<12x12xf32>
    %cst_187 = arith.constant 0.000000e+00 : f32
    %331 = vector.broadcast %cst_187 : f32 to vector<12x12xf32>
    %332 = arith.cmpf ogt, %330, %331 : vector<12x12xf32>
    %cst_188 = arith.constant 0.000000e+00 : f32
    %333 = vector.broadcast %cst_188 : f32 to vector<12x12xf32>
    %334 = arith.cmpf ogt, %328, %333 : vector<12x12xf32>
    %335 = arith.andi %332, %334 : vector<12x12xi1>
    %c0_189 = arith.constant 0 : index
    %c0_190 = arith.constant 0 : index
    %336 = vector.load %arg8[%c0_189, %c0_190] : memref<12x12xf32, #tpu.memory_space<vmem>>, vector<12x12xf32>
    %cst_191 = arith.constant 0.000000e+00 : f32
    %337 = vector.broadcast %cst_191 : f32 to vector<12x12xf32>
    %338 = arith.select %335, %328, %337 : vector<12x12xi1>, vector<12x12xf32>
    %339 = arith.addf %336, %338 : vector<12x12xf32>
    %c0_192 = arith.constant 0 : index
    %c0_193 = arith.constant 0 : index
    %340 = vector.load %arg8[%c0_192, %c0_193] : memref<12x12xf32, #tpu.memory_space<vmem>>, vector<12x12xf32>
    tpu.vector_store %arg8[%c0_192, %c0_193], %339 {strides = array<i32>} : memref<12x12xf32, #tpu.memory_space<vmem>>, vector<12x12xf32>,
    %c0_194 = arith.constant 0 : index
    %c0_195 = arith.constant 0 : index
    %341 = vector.load %arg9[%c0_194, %c0_195] : memref<12x12xf32, #tpu.memory_space<vmem>>, vector<12x12xf32>
    %342 = arith.extui %335 : vector<12x12xi1> to vector<12x12xi32>
    %343 = arith.sitofp %342 : vector<12x12xi32> to vector<12x12xf32>
    %344 = arith.addf %341, %343 : vector<12x12xf32>
    %c0_196 = arith.constant 0 : index
    %c0_197 = arith.constant 0 : index
    %345 = vector.load %arg9[%c0_196, %c0_197] : memref<12x12xf32, #tpu.memory_space<vmem>>, vector<12x12xf32>
    tpu.vector_store %arg9[%c0_196, %c0_197], %344 {strides = array<i32>} : memref<12x12xf32, #tpu.memory_space<vmem>>, vector<12x12xf32>,
    %c8_i32_198 = arith.constant 8 : i32
    %346 = arith.index_cast %c8_i32_198 : i32 to index
    %c0_199 = arith.constant 0 : index
    %347 = vector.load %arg5[%346, %c0_199] : memref<12x12xf32, #tpu.memory_space<vmem>>, vector<1x12xf32>
    %348 = arith.index_cast %c8_i32_198 : i32 to index
    %c0_200 = arith.constant 0 : index
    %349 = vector.load %arg6[%348, %c0_200] : memref<12x12xf32, #tpu.memory_space<vmem>>, vector<1x12xf32>
    %c0_201 = arith.constant 0 : index
    %c0_202 = arith.constant 0 : index
    %350 = vector.load %arg5[%c0_201, %c0_202] : memref<12x12xf32, #tpu.memory_space<vmem>>, vector<12x12xf32>
    %c0_203 = arith.constant 0 : index
    %c0_204 = arith.constant 0 : index
    %351 = vector.load %arg7[%c0_203, %c0_204] : memref<12x12xf32, #tpu.memory_space<vmem>>, vector<12x12xf32>
    %352 = vector.broadcast %347 : vector<1x12xf32> to vector<12x12xf32>
    %353 = arith.subf %352, %350 : vector<12x12xf32>
    %354 = vector.broadcast %cst_53 : f32 to vector<12x12xf32>
    %355 = arith.addf %353, %354 : vector<12x12xf32>
    %356 = vector.broadcast %349 : vector<1x12xf32> to vector<12x12xf32>
    %357 = arith.mulf %356, %351 : vector<12x12xf32>
    %cst_205 = arith.constant 0.000000e+00 : f32
    %358 = vector.broadcast %cst_205 : f32 to vector<12x12xf32>
    %359 = arith.cmpf ogt, %357, %358 : vector<12x12xf32>
    %cst_206 = arith.constant 0.000000e+00 : f32
    %360 = vector.broadcast %cst_206 : f32 to vector<12x12xf32>
    %361 = arith.cmpf ogt, %355, %360 : vector<12x12xf32>
    %362 = arith.andi %359, %361 : vector<12x12xi1>
    %c0_207 = arith.constant 0 : index
    %c0_208 = arith.constant 0 : index
    %363 = vector.load %arg8[%c0_207, %c0_208] : memref<12x12xf32, #tpu.memory_space<vmem>>, vector<12x12xf32>
    %cst_209 = arith.constant 0.000000e+00 : f32
    %364 = vector.broadcast %cst_209 : f32 to vector<12x12xf32>
    %365 = arith.select %362, %355, %364 : vector<12x12xi1>, vector<12x12xf32>
    %366 = arith.addf %363, %365 : vector<12x12xf32>
    %c0_210 = arith.constant 0 : index
    %c0_211 = arith.constant 0 : index
    %367 = vector.load %arg8[%c0_210, %c0_211] : memref<12x12xf32, #tpu.memory_space<vmem>>, vector<12x12xf32>
    tpu.vector_store %arg8[%c0_210, %c0_211], %366 {strides = array<i32>} : memref<12x12xf32, #tpu.memory_space<vmem>>, vector<12x12xf32>,
    %c0_212 = arith.constant 0 : index
    %c0_213 = arith.constant 0 : index
    %368 = vector.load %arg9[%c0_212, %c0_213] : memref<12x12xf32, #tpu.memory_space<vmem>>, vector<12x12xf32>
    %369 = arith.extui %362 : vector<12x12xi1> to vector<12x12xi32>
    %370 = arith.sitofp %369 : vector<12x12xi32> to vector<12x12xf32>
    %371 = arith.addf %368, %370 : vector<12x12xf32>
    %c0_214 = arith.constant 0 : index
    %c0_215 = arith.constant 0 : index
    %372 = vector.load %arg9[%c0_214, %c0_215] : memref<12x12xf32, #tpu.memory_space<vmem>>, vector<12x12xf32>
    tpu.vector_store %arg9[%c0_214, %c0_215], %371 {strides = array<i32>} : memref<12x12xf32, #tpu.memory_space<vmem>>, vector<12x12xf32>,
    %c9_i32_216 = arith.constant 9 : i32
    %373 = arith.index_cast %c9_i32_216 : i32 to index
    %c0_217 = arith.constant 0 : index
    %374 = vector.load %arg5[%373, %c0_217] : memref<12x12xf32, #tpu.memory_space<vmem>>, vector<1x12xf32>
    %375 = arith.index_cast %c9_i32_216 : i32 to index
    %c0_218 = arith.constant 0 : index
    %376 = vector.load %arg6[%375, %c0_218] : memref<12x12xf32, #tpu.memory_space<vmem>>, vector<1x12xf32>
    %c0_219 = arith.constant 0 : index
    %c0_220 = arith.constant 0 : index
    %377 = vector.load %arg5[%c0_219, %c0_220] : memref<12x12xf32, #tpu.memory_space<vmem>>, vector<12x12xf32>
    %c0_221 = arith.constant 0 : index
    %c0_222 = arith.constant 0 : index
    %378 = vector.load %arg7[%c0_221, %c0_222] : memref<12x12xf32, #tpu.memory_space<vmem>>, vector<12x12xf32>
    %379 = vector.broadcast %374 : vector<1x12xf32> to vector<12x12xf32>
    %380 = arith.subf %379, %377 : vector<12x12xf32>
    %381 = vector.broadcast %cst_53 : f32 to vector<12x12xf32>
    %382 = arith.addf %380, %381 : vector<12x12xf32>
    %383 = vector.broadcast %376 : vector<1x12xf32> to vector<12x12xf32>
    %384 = arith.mulf %383, %378 : vector<12x12xf32>
    %cst_223 = arith.constant 0.000000e+00 : f32
    %385 = vector.broadcast %cst_223 : f32 to vector<12x12xf32>
    %386 = arith.cmpf ogt, %384, %385 : vector<12x12xf32>
    %cst_224 = arith.constant 0.000000e+00 : f32
    %387 = vector.broadcast %cst_224 : f32 to vector<12x12xf32>
    %388 = arith.cmpf ogt, %382, %387 : vector<12x12xf32>
    %389 = arith.andi %386, %388 : vector<12x12xi1>
    %c0_225 = arith.constant 0 : index
    %c0_226 = arith.constant 0 : index
    %390 = vector.load %arg8[%c0_225, %c0_226] : memref<12x12xf32, #tpu.memory_space<vmem>>, vector<12x12xf32>
    %cst_227 = arith.constant 0.000000e+00 : f32
    %391 = vector.broadcast %cst_227 : f32 to vector<12x12xf32>
    %392 = arith.select %389, %382, %391 : vector<12x12xi1>, vector<12x12xf32>
    %393 = arith.addf %390, %392 : vector<12x12xf32>
    %c0_228 = arith.constant 0 : index
    %c0_229 = arith.constant 0 : index
    %394 = vector.load %arg8[%c0_228, %c0_229] : memref<12x12xf32, #tpu.memory_space<vmem>>, vector<12x12xf32>
    tpu.vector_store %arg8[%c0_228, %c0_229], %393 {strides = array<i32>} : memref<12x12xf32, #tpu.memory_space<vmem>>, vector<12x12xf32>,
    %c0_230 = arith.constant 0 : index
    %c0_231 = arith.constant 0 : index
    %395 = vector.load %arg9[%c0_230, %c0_231] : memref<12x12xf32, #tpu.memory_space<vmem>>, vector<12x12xf32>
    %396 = arith.extui %389 : vector<12x12xi1> to vector<12x12xi32>
    %397 = arith.sitofp %396 : vector<12x12xi32> to vector<12x12xf32>
    %398 = arith.addf %395, %397 : vector<12x12xf32>
    %c0_232 = arith.constant 0 : index
    %c0_233 = arith.constant 0 : index
    %399 = vector.load %arg9[%c0_232, %c0_233] : memref<12x12xf32, #tpu.memory_space<vmem>>, vector<12x12xf32>
    tpu.vector_store %arg9[%c0_232, %c0_233], %398 {strides = array<i32>} : memref<12x12xf32, #tpu.memory_space<vmem>>, vector<12x12xf32>,
    %c10_i32_234 = arith.constant 10 : i32
    %400 = arith.index_cast %c10_i32_234 : i32 to index
    %c0_235 = arith.constant 0 : index
    %401 = vector.load %arg5[%400, %c0_235] : memref<12x12xf32, #tpu.memory_space<vmem>>, vector<1x12xf32>
    %402 = arith.index_cast %c10_i32_234 : i32 to index
    %c0_236 = arith.constant 0 : index
    %403 = vector.load %arg6[%402, %c0_236] : memref<12x12xf32, #tpu.memory_space<vmem>>, vector<1x12xf32>
    %c0_237 = arith.constant 0 : index
    %c0_238 = arith.constant 0 : index
    %404 = vector.load %arg5[%c0_237, %c0_238] : memref<12x12xf32, #tpu.memory_space<vmem>>, vector<12x12xf32>
    %c0_239 = arith.constant 0 : index
    %c0_240 = arith.constant 0 : index
    %405 = vector.load %arg7[%c0_239, %c0_240] : memref<12x12xf32, #tpu.memory_space<vmem>>, vector<12x12xf32>
    %406 = vector.broadcast %401 : vector<1x12xf32> to vector<12x12xf32>
    %407 = arith.subf %406, %404 : vector<12x12xf32>
    %408 = vector.broadcast %cst_53 : f32 to vector<12x12xf32>
    %409 = arith.addf %407, %408 : vector<12x12xf32>
    %410 = vector.broadcast %403 : vector<1x12xf32> to vector<12x12xf32>
    %411 = arith.mulf %410, %405 : vector<12x12xf32>
    %cst_241 = arith.constant 0.000000e+00 : f32
    %412 = vector.broadcast %cst_241 : f32 to vector<12x12xf32>
    %413 = arith.cmpf ogt, %411, %412 : vector<12x12xf32>
    %cst_242 = arith.constant 0.000000e+00 : f32
    %414 = vector.broadcast %cst_242 : f32 to vector<12x12xf32>
    %415 = arith.cmpf ogt, %409, %414 : vector<12x12xf32>
    %416 = arith.andi %413, %415 : vector<12x12xi1>
    %c0_243 = arith.constant 0 : index
    %c0_244 = arith.constant 0 : index
    %417 = vector.load %arg8[%c0_243, %c0_244] : memref<12x12xf32, #tpu.memory_space<vmem>>, vector<12x12xf32>
    %cst_245 = arith.constant 0.000000e+00 : f32
    %418 = vector.broadcast %cst_245 : f32 to vector<12x12xf32>
    %419 = arith.select %416, %409, %418 : vector<12x12xi1>, vector<12x12xf32>
    %420 = arith.addf %417, %419 : vector<12x12xf32>
    %c0_246 = arith.constant 0 : index
    %c0_247 = arith.constant 0 : index
    %421 = vector.load %arg8[%c0_246, %c0_247] : memref<12x12xf32, #tpu.memory_space<vmem>>, vector<12x12xf32>
    tpu.vector_store %arg8[%c0_246, %c0_247], %420 {strides = array<i32>} : memref<12x12xf32, #tpu.memory_space<vmem>>, vector<12x12xf32>,
    %c0_248 = arith.constant 0 : index
    %c0_249 = arith.constant 0 : index
    %422 = vector.load %arg9[%c0_248, %c0_249] : memref<12x12xf32, #tpu.memory_space<vmem>>, vector<12x12xf32>
    %423 = arith.extui %416 : vector<12x12xi1> to vector<12x12xi32>
    %424 = arith.sitofp %423 : vector<12x12xi32> to vector<12x12xf32>
    %425 = arith.addf %422, %424 : vector<12x12xf32>
    %c0_250 = arith.constant 0 : index
    %c0_251 = arith.constant 0 : index
    %426 = vector.load %arg9[%c0_250, %c0_251] : memref<12x12xf32, #tpu.memory_space<vmem>>, vector<12x12xf32>
    tpu.vector_store %arg9[%c0_250, %c0_251], %425 {strides = array<i32>} : memref<12x12xf32, #tpu.memory_space<vmem>>, vector<12x12xf32>,
    %c11_i32_252 = arith.constant 11 : i32
    %427 = arith.index_cast %c11_i32_252 : i32 to index
    %c0_253 = arith.constant 0 : index
    %428 = vector.load %arg5[%427, %c0_253] : memref<12x12xf32, #tpu.memory_space<vmem>>, vector<1x12xf32>
    %429 = arith.index_cast %c11_i32_252 : i32 to index
    %c0_254 = arith.constant 0 : index
    %430 = vector.load %arg6[%429, %c0_254] : memref<12x12xf32, #tpu.memory_space<vmem>>, vector<1x12xf32>
    %c0_255 = arith.constant 0 : index
    %c0_256 = arith.constant 0 : index
    %431 = vector.load %arg5[%c0_255, %c0_256] : memref<12x12xf32, #tpu.memory_space<vmem>>, vector<12x12xf32>
    %c0_257 = arith.constant 0 : index
    %c0_258 = arith.constant 0 : index
    %432 = vector.load %arg7[%c0_257, %c0_258] : memref<12x12xf32, #tpu.memory_space<vmem>>, vector<12x12xf32>
    %433 = vector.broadcast %428 : vector<1x12xf32> to vector<12x12xf32>
    %434 = arith.subf %433, %431 : vector<12x12xf32>
    %435 = vector.broadcast %cst_53 : f32 to vector<12x12xf32>
    %436 = arith.addf %434, %435 : vector<12x12xf32>
    %437 = vector.broadcast %430 : vector<1x12xf32> to vector<12x12xf32>
    %438 = arith.mulf %437, %432 : vector<12x12xf32>
    %cst_259 = arith.constant 0.000000e+00 : f32
    %439 = vector.broadcast %cst_259 : f32 to vector<12x12xf32>
    %440 = arith.cmpf ogt, %438, %439 : vector<12x12xf32>
    %cst_260 = arith.constant 0.000000e+00 : f32
    %441 = vector.broadcast %cst_260 : f32 to vector<12x12xf32>
    %442 = arith.cmpf ogt, %436, %441 : vector<12x12xf32>
    %443 = arith.andi %440, %442 : vector<12x12xi1>
    %c0_261 = arith.constant 0 : index
    %c0_262 = arith.constant 0 : index
    %444 = vector.load %arg8[%c0_261, %c0_262] : memref<12x12xf32, #tpu.memory_space<vmem>>, vector<12x12xf32>
    %cst_263 = arith.constant 0.000000e+00 : f32
    %445 = vector.broadcast %cst_263 : f32 to vector<12x12xf32>
    %446 = arith.select %443, %436, %445 : vector<12x12xi1>, vector<12x12xf32>
    %447 = arith.addf %444, %446 : vector<12x12xf32>
    %c0_264 = arith.constant 0 : index
    %c0_265 = arith.constant 0 : index
    %448 = vector.load %arg8[%c0_264, %c0_265] : memref<12x12xf32, #tpu.memory_space<vmem>>, vector<12x12xf32>
    tpu.vector_store %arg8[%c0_264, %c0_265], %447 {strides = array<i32>} : memref<12x12xf32, #tpu.memory_space<vmem>>, vector<12x12xf32>,
    %c0_266 = arith.constant 0 : index
    %c0_267 = arith.constant 0 : index
    %449 = vector.load %arg9[%c0_266, %c0_267] : memref<12x12xf32, #tpu.memory_space<vmem>>, vector<12x12xf32>
    %450 = arith.extui %443 : vector<12x12xi1> to vector<12x12xi32>
    %451 = arith.sitofp %450 : vector<12x12xi32> to vector<12x12xf32>
    %452 = arith.addf %449, %451 : vector<12x12xf32>
    %c0_268 = arith.constant 0 : index
    %c0_269 = arith.constant 0 : index
    %453 = vector.load %arg9[%c0_268, %c0_269] : memref<12x12xf32, #tpu.memory_space<vmem>>, vector<12x12xf32>
    tpu.vector_store %arg9[%c0_268, %c0_269], %452 {strides = array<i32>} : memref<12x12xf32, #tpu.memory_space<vmem>>, vector<12x12xf32>,
    %c12_i32_270 = arith.constant 12 : i32
    %c0_271 = arith.constant 0 : index
    %c0_272 = arith.constant 0 : index
    %454 = vector.load %arg8[%c0_271, %c0_272] : memref<12x12xf32, #tpu.memory_space<vmem>>, vector<12x12xf32>
    %cst_273 = arith.constant dense<0.000000e+00> : vector<12xf32>
    %455 = vector.multi_reduction <add>, %454, %cst_273 [1] : vector<12x12xf32> to vector<12xf32>
    %456 = vector.shape_cast %455 : vector<12xf32> to vector<12x1xf32>
    %cst_274 = arith.constant dense<0.000000e+00> : vector<1xf32>
    %457 = vector.multi_reduction <add>, %456, %cst_274 [0] : vector<12x1xf32> to vector<1xf32>
    %458 = vector.shape_cast %457 : vector<1xf32> to vector<1x1xf32>
    %c0_275 = arith.constant 0 : index
    %c0_276 = arith.constant 0 : index
    %459 = vector.load %arg9[%c0_275, %c0_276] : memref<12x12xf32, #tpu.memory_space<vmem>>, vector<12x12xf32>
    %cst_277 = arith.constant dense<0.000000e+00> : vector<12xf32>
    %460 = vector.multi_reduction <add>, %459, %cst_277 [1] : vector<12x12xf32> to vector<12xf32>
    %461 = vector.shape_cast %460 : vector<12xf32> to vector<12x1xf32>
    %cst_278 = arith.constant dense<0.000000e+00> : vector<1xf32>
    %462 = vector.multi_reduction <add>, %461, %cst_278 [0] : vector<12x1xf32> to vector<1xf32>
    %463 = vector.shape_cast %462 : vector<1xf32> to vector<1x1xf32>
    %464 = tpu.concatenate %458, %463 in 1 : vector<1x1xf32>, vector<1x1xf32> -> vector<1x2xf32>
    %c0_279 = arith.constant 0 : index
    %c0_280 = arith.constant 0 : index
    %465 = vector.load %arg3[%c0_279, %c0_280] : memref<1x2xf32, #tpu.memory_space<vmem>>, vector<1x2xf32>
    tpu.vector_store %arg3[%c0_279, %c0_280], %464 {strides = array<i32>} : memref<1x2xf32, #tpu.memory_space<vmem>>, vector<1x2xf32>,
    return
  }
  func.func @transform_0(%arg0: i32, %arg1: memref<12xi32, #tpu.memory_space<smem>>) -> (i32, i32) {
    %c0_i32 = arith.constant 0 : i32
    %c0_i32_0 = arith.constant 0 : i32
    %c0_i32_1 = arith.constant 0 : i32
    return %c0_i32, %c0_i32_0 : i32, i32
  }
  func.func @transform_1(%arg0: i32, %arg1: memref<12xi32, #tpu.memory_space<smem>>) -> (i32, i32) {
    %c0_i32 = arith.constant 0 : i32
    %c0_i32_0 = arith.constant 0 : i32
    %c0_i32_1 = arith.constant 0 : i32
    return %c0_i32, %c0_i32_0 : i32, i32
  }
}

</mosaic_0001>

<llo_original>
// kernel: forward.2
$region0: #{forward.2}
  #allocation0 [shape = 'u32[]', space=smem, size = 0x4, offset = 0x4, fixed_abs, tag = 'smem constant byte address 0x4 - core index']
  #allocation1 [shape = 'u32[144,128]{1,0:T(1,128)}', space=vmem, size = 0x12000, scoped, tag = 'internal scratch']
  #allocation2 [shape = 's32[1]{0}', space=sflag, size = 0x4, scoped, tag = 'scoped memory for forward.2']
  #allocation3 [shape = 'u8[512]{0}', space=smem, size = 0x200, scoped, tag = 'prefetched SMEM operand 0']
  %s0 = inlined_call_operand.vmem [shape: s32[4], index: 0, kind: input, shape index: {}]
  %s1 = inlined_call_operand.vmem [shape: f32[4,8,128], index: 1, kind: input, shape index: {}]
  %s2 = inlined_call_operand.vmem [shape: f32[4,8], index: 2, kind: output, shape index: {0}]
  %s3 = inlined_call_operand.hbm [shape: f32[1,1], index: 3, kind: output, shape index: {1}]
  %4 = xla_tuple %s2, %s3
  %s5 = sld [smem:[#allocation0]]
  $region22: #{forward.2} parent=0
    _
  %s7 = ssub.s32 1, %s5
  %s8 = scalar_select 0, %s7, %s5
  %s9 = sshll.u32 %s0, 4
  %s10 = int_to_ptr.vmem [resolvable:$true] %s9
  %12 = dma.vmem_to_smem %s10, 16, [#allocation3], [#allocation2]
  %13 = dma.done [#allocation2], 16
  %14 = sfence
  $region1: #{forward.2} parent=0
    #allocation4 [shape = 'u8[512]{0}', space=vmem, size = 0x400, scoped, tag = 'output window, operand 1, single buffered']
    #allocation5 [shape = 's32[1]{0}', space=sflag, size = 0x4, scoped, tag = 'scoped memory for forward.2']
    %15 = vsyncpa [#allocation5], 0
    // Predicated region
    $region2: #{forward.2} parent=1 // pred_check
      _
    $region3: #{forward.2} parent=1 // pred_check_branch
      %17 = sbr.rel (0) target = $region5
    $region4: #{forward.2} parent=1 // pred_region
      _
    $region5: #{forward.2} parent=1 // pred_fallthru
      _
    %s18 = sld [smem:[#allocation3]]
    %s19 = smul.u32 %s18, 8
    %s20 = scalar_lea.vmem %s1, %s19
    %v21 = vld [vmem:[%s20] sm:$0xff]
    %v22 = vlaneseq
    %v23 = vshrl.u32 %v22, 7
    %v24 = vsub.s32 0, %v23
    %v25 = vrot.slane %v21, %v24
    %v26 = vsub.f32 %v21, %v25
    %v27 = vmul.f32 %v26, %v26
    %28 = vmatprep.subr.mxu0 0.0
    %29 = vmatpush1.xpose.msra.mxu0 %v27
    %30 = vmatprep.subr.mxu0 0.0
    %31 = vmatpush1.xpose.msra.mxu0 0.0
    %32 = vmatprep.subr.mxu0 0.0
    %33 = vmatpush1.xpose.msra.mxu0 0.0
    %34 = vmatprep.subr.mxu0 0.0
    %35 = vmatpush1.xpose.msra.mxu0 0.0
    %36 = vmatprep.subr.mxu0 0.0
    %37 = vmatpush1.xpose.msra.mxu0 0.0
    %38 = vmatprep.subr.mxu0 0.0
    %39 = vmatpush1.xpose.msra.mxu0 0.0
    %40 = vmatprep.subr.mxu0 0.0
    %41 = vmatpush1.xpose.msra.mxu0 0.0
    %42 = vmatprep.subr.mxu0 0.0
    %43 = vmatpush1.xpose.msra.mxu0 0.0
    %44 = vmatprep.subr.mxu0 0.0
    %45 = vmatpush1.xpose.msra.mxu0 0.0
    %46 = vmatprep.subr.mxu0 0.0
    %47 = vmatpush1.xpose.msra.mxu0 0.0
    %48 = vmatprep.subr.mxu0 0.0
    %49 = vmatpush1.xpose.msra.mxu0 0.0
    %50 = vmatprep.subr.mxu0 0.0
    %51 = vmatpush1.xpose.msra.mxu0 0.0
    %52 = vmatprep.subr.mxu0 0.0
    %53 = vmatpush1.xpose.msra.mxu0 0.0
    %54 = vmatprep.subr.mxu0 0.0
    %55 = vmatpush1.xpose.msra.mxu0 0.0
    %56 = vmatprep.subr.mxu0 0.0
    %57 = vmatpush1.xpose.msra.mxu0 0.0
    %58 = vmatprep.subr.mxu0 0.0
    %59 = vmatpush1.xpose.msra.mxu0 0.0
    %60 = vmatprep.subr.mxu0 0.0
    %61 = vmatpush1.xpose.msra.mxu0 0.0
    %62 = vmatprep.subr.mxu0 0.0
    %63 = vmatpush1.xpose.msra.mxu0 0.0
    %64 = vmatprep.subr.mxu0 0.0
    %65 = vmatpush1.xpose.msra.mxu0 0.0
    %66 = vmatprep.subr.mxu0 0.0
    %67 = vmatpush1.xpose.msra.mxu0 0.0
    %68 = vmatprep.subr.mxu0 0.0
    %69 = vmatpush1.xpose.msra.mxu0 0.0
    %70 = vmatprep.subr.mxu0 0.0
    %71 = vmatpush1.xpose.msra.mxu0 0.0
    %72 = vmatprep.subr.mxu0 0.0
    %73 = vmatpush1.xpose.msra.mxu0 0.0
    %74 = vmatprep.subr.mxu0 0.0
    %75 = vmatpush1.xpose.msra.mxu0 0.0
    %76 = vmatprep.subr.mxu0 0.0
    %77 = vmatpush1.xpose.msra.mxu0 0.0
    %78 = vmatprep.subr.mxu0 0.0
    %79 = vmatpush1.xpose.msra.mxu0 0.0
    %80 = vmatprep.subr.mxu0 0.0
    %81 = vmatpush1.xpose.msra.mxu0 0.0
    %82 = vmatprep.subr.mxu0 0.0
    %83 = vmatpush1.xpose.msra.mxu0 0.0
    %84 = vmatprep.subr.mxu0 0.0
    %85 = vmatpush1.xpose.msra.mxu0 0.0
    %86 = vmatprep.subr.mxu0 0.0
    %87 = vmatpush1.xpose.msra.mxu0 0.0
    %88 = vmatprep.subr.mxu0 0.0
    %89 = vmatpush1.xpose.msra.mxu0 0.0
    %90 = vmatprep.subr.mxu0 0.0
    %91 = vmatpush1.xpose.msra.mxu0 0.0
    %92 = vmatprep.mubr.f32.mxu0 0.0
    %93 = vmatmul.mubr.f32.gmra.mrb[0].mxu0 1.0
    %v94 = vpop.f32.mrb[0].mxu0
    %v95 = vadd.f32 0.0, %v94
    %v96 = vpop.f32.mrb[0].mxu0
    %97 = vdwg.mxu0
    %v99 = vrot.slane %v21, 7
    %v101 = vsub.f32 %v21, %v99
    %v102 = vmul.f32 %v101, %v101
    %vm103 = vcmask 1047553
    %v104 = vsel %vm103, %v102, 0.0
    %105 = vadd.xlane.f32.xlu0 %v104
    %v106 = vpop.xlane.xlu0 %105
    %v108 = vrot.slane %v106, 1
    %vm110 = vcmask 1046528
    %v111 = vsel %vm110, %v108, 0.0
    %v112 = vrot.slane %v111, 4
    %v113 = vadd.f32 %v111, %v112
    %v114 = vrot.slane %v113, 2
    %v115 = vadd.f32 %v113, %v114
    %v116 = vrot.slane %v115, 1
    %v117 = vadd.f32 %v115, %v116
    %v118 = vadd.f32 %v117, 0.0
    %s119 = sld [smem:[#allocation3 + $0x1]]
    %s120 = smul.u32 %s119, 8
    %s121 = scalar_lea.vmem %s1, %s120
    %v122 = vld [vmem:[%s121] sm:$0xff]
    %v123 = vlaneseq
    %v124 = vshrl.u32 %v123, 7
    %v125 = vsub.s32 0, %v124
    %v126 = vrot.slane %v122, %v125
    %v127 = vsub.f32 %v122, %v126
    %v128 = vmul.f32 %v127, %v127
    %129 = vmatprep.subr.mxu0 0.0
    %130 = vmatpush1.xpose.msra.mxu0 %v128
    %131 = vmatprep.subr.mxu0 0.0
    %132 = vmatpush1.xpose.msra.mxu0 0.0
    %133 = vmatprep.subr.mxu0 0.0
    %134 = vmatpush1.xpose.msra.mxu0 0.0
    %135 = vmatprep.subr.mxu0 0.0
    %136 = vmatpush1.xpose.msra.mxu0 0.0
    %137 = vmatprep.subr.mxu0 0.0
    %138 = vmatpush1.xpose.msra.mxu0 0.0
    %139 = vmatprep.subr.mxu0 0.0
    %140 = vmatpush1.xpose.msra.mxu0 0.0
    %141 = vmatprep.subr.mxu0 0.0
    %142 = vmatpush1.xpose.msra.mxu0 0.0
    %143 = vmatprep.subr.mxu0 0.0
    %144 = vmatpush1.xpose.msra.mxu0 0.0
    %145 = vmatprep.subr.mxu0 0.0
    %146 = vmatpush1.xpose.msra.mxu0 0.0
    %147 = vmatprep.subr.mxu0 0.0
    %148 = vmatpush1.xpose.msra.mxu0 0.0
    %149 = vmatprep.subr.mxu0 0.0
    %150 = vmatpush1.xpose.msra.mxu0 0.0
    %151 = vmatprep.subr.mxu0 0.0
    %152 = vmatpush1.xpose.msra.mxu0 0.0
    %153 = vmatprep.subr.mxu0 0.0
    %154 = vmatpush1.xpose.msra.mxu0 0.0
    %155 = vmatprep.subr.mxu0 0.0
    %156 = vmatpush1.xpose.msra.mxu0 0.0
    %157 = vmatprep.subr.mxu0 0.0
    %158 = vmatpush1.xpose.msra.mxu0 0.0
    %159 = vmatprep.subr.mxu0 0.0
    %160 = vmatpush1.xpose.msra.mxu0 0.0
    %161 = vmatprep.subr.mxu0 0.0
    %162 = vmatpush1.xpose.msra.mxu0 0.0
    %163 = vmatprep.subr.mxu0 0.0
    %164 = vmatpush1.xpose.msra.mxu0 0.0
    %165 = vmatprep.subr.mxu0 0.0
    %166 = vmatpush1.xpose.msra.mxu0 0.0
    %167 = vmatprep.subr.mxu0 0.0
    %168 = vmatpush1.xpose.msra.mxu0 0.0
    %169 = vmatprep.subr.mxu0 0.0
    %170 = vmatpush1.xpose.msra.mxu0 0.0
    %171 = vmatprep.subr.mxu0 0.0
    %172 = vmatpush1.xpose.msra.mxu0 0.0
    %173 = vmatprep.subr.mxu0 0.0
    %174 = vmatpush1.xpose.msra.mxu0 0.0
    %175 = vmatprep.subr.mxu0 0.0
    %176 = vmatpush1.xpose.msra.mxu0 0.0
    %177 = vmatprep.subr.mxu0 0.0
    %178 = vmatpush1.xpose.msra.mxu0 0.0
    %179 = vmatprep.subr.mxu0 0.0
    %180 = vmatpush1.xpose.msra.mxu0 0.0
    %181 = vmatprep.subr.mxu0 0.0
    %182 = vmatpush1.xpose.msra.mxu0 0.0
    %183 = vmatprep.subr.mxu0 0.0
    %184 = vmatpush1.xpose.msra.mxu0 0.0
    %185 = vmatprep.subr.mxu0 0.0
    %186 = vmatpush1.xpose.msra.mxu0 0.0
    %187 = vmatprep.subr.mxu0 0.0
    %188 = vmatpush1.xpose.msra.mxu0 0.0
    %189 = vmatprep.subr.mxu0 0.0
    %190 = vmatpush1.xpose.msra.mxu0 0.0
    %191 = vmatprep.subr.mxu0 0.0
    %192 = vmatpush1.xpose.msra.mxu0 0.0
    %193 = vmatprep.mubr.f32.mxu0 0.0
    %194 = vmatmul.mubr.f32.gmra.mrb[0].mxu0 1.0
    %v195 = vpop.f32.mrb[0].mxu0
    %v196 = vadd.f32 0.0, %v195
    %v197 = vpop.f32.mrb[0].mxu0
    %198 = vdwg.mxu0
    %v200 = vrot.slane %v122, 7
    %v202 = vsub.f32 %v122, %v200
    %v203 = vmul.f32 %v202, %v202
    %v204 = vsel %vm103, %v203, 0.0
    %205 = vadd.xlane.f32.xlu0 %v204
    %v206 = vpop.xlane.xlu0 %205
    %v208 = vrot.slane %v206, 1
    %v210 = vsel %vm110, %v208, 0.0
    %v211 = vrot.slane %v210, 4
    %v212 = vadd.f32 %v210, %v211
    %v213 = vrot.slane %v212, 2
    %v214 = vadd.f32 %v212, %v213
    %v215 = vrot.slane %v214, 1
    %v216 = vadd.f32 %v214, %v215
    %v217 = vadd.f32 %v118, %v216
    %s218 = sld [smem:[#allocation3 + $0x2]]
    %s219 = smul.u32 %s218, 8
    %s220 = scalar_lea.vmem %s1, %s219
    %v221 = vld [vmem:[%s220] sm:$0xff]
    %v222 = vsub.f32 %v221, %v25
    %v223 = vmul.f32 %v222, %v222
    %224 = vmatprep.subr.mxu0 0.0
    %225 = vmatpush1.xpose.msra.mxu0 %v223
    %226 = vmatprep.subr.mxu0 0.0
    %227 = vmatpush1.xpose.msra.mxu0 0.0
    %228 = vmatprep.subr.mxu0 0.0
    %229 = vmatpush1.xpose.msra.mxu0 0.0
    %230 = vmatprep.subr.mxu0 0.0
    %231 = vmatpush1.xpose.msra.mxu0 0.0
    %232 = vmatprep.subr.mxu0 0.0
    %233 = vmatpush1.xpose.msra.mxu0 0.0
    %234 = vmatprep.subr.mxu0 0.0
    %235 = vmatpush1.xpose.msra.mxu0 0.0
    %236 = vmatprep.subr.mxu0 0.0
    %237 = vmatpush1.xpose.msra.mxu0 0.0
    %238 = vmatprep.subr.mxu0 0.0
    %239 = vmatpush1.xpose.msra.mxu0 0.0
    %240 = vmatprep.subr.mxu0 0.0
    %241 = vmatpush1.xpose.msra.mxu0 0.0
    %242 = vmatprep.subr.mxu0 0.0
    %243 = vmatpush1.xpose.msra.mxu0 0.0
    %244 = vmatprep.subr.mxu0 0.0
    %245 = vmatpush1.xpose.msra.mxu0 0.0
    %246 = vmatprep.subr.mxu0 0.0
    %247 = vmatpush1.xpose.msra.mxu0 0.0
    %248 = vmatprep.subr.mxu0 0.0
    %249 = vmatpush1.xpose.msra.mxu0 0.0
    %250 = vmatprep.subr.mxu0 0.0
    %251 = vmatpush1.xpose.msra.mxu0 0.0
    %252 = vmatprep.subr.mxu0 0.0
    %253 = vmatpush1.xpose.msra.mxu0 0.0
    %254 = vmatprep.subr.mxu0 0.0
    %255 = vmatpush1.xpose.msra.mxu0 0.0
    %256 = vmatprep.subr.mxu0 0.0
    %257 = vmatpush1.xpose.msra.mxu0 0.0
    %258 = vmatprep.subr.mxu0 0.0
    %259 = vmatpush1.xpose.msra.mxu0 0.0
    %260 = vmatprep.subr.mxu0 0.0
    %261 = vmatpush1.xpose.msra.mxu0 0.0
    %262 = vmatprep.subr.mxu0 0.0
    %263 = vmatpush1.xpose.msra.mxu0 0.0
    %264 = vmatprep.subr.mxu0 0.0
    %265 = vmatpush1.xpose.msra.mxu0 0.0
    %266 = vmatprep.subr.mxu0 0.0
    %267 = vmatpush1.xpose.msra.mxu0 0.0
    %268 = vmatprep.subr.mxu0 0.0
    %269 = vmatpush1.xpose.msra.mxu0 0.0
    %270 = vmatprep.subr.mxu0 0.0
    %271 = vmatpush1.xpose.msra.mxu0 0.0
    %272 = vmatprep.subr.mxu0 0.0
    %273 = vmatpush1.xpose.msra.mxu0 0.0
    %274 = vmatprep.subr.mxu0 0.0
    %275 = vmatpush1.xpose.msra.mxu0 0.0
    %276 = vmatprep.subr.mxu0 0.0
    %277 = vmatpush1.xpose.msra.mxu0 0.0
    %278 = vmatprep.subr.mxu0 0.0
    %279 = vmatpush1.xpose.msra.mxu0 0.0
    %280 = vmatprep.subr.mxu0 0.0
    %281 = vmatpush1.xpose.msra.mxu0 0.0
    %282 = vmatprep.subr.mxu0 0.0
    %283 = vmatpush1.xpose.msra.mxu0 0.0
    %284 = vmatprep.subr.mxu0 0.0
    %285 = vmatpush1.xpose.msra.mxu0 0.0
    %286 = vmatprep.subr.mxu0 0.0
    %287 = vmatpush1.xpose.msra.mxu0 0.0
    %288 = vmatprep.mubr.f32.mxu0 0.0
    %289 = vmatmul.mubr.f32.gmra.mrb[0].mxu0 1.0
    %v290 = vpop.f32.mrb[0].mxu0
    %v291 = vadd.f32 0.0, %v290
    %v292 = vpop.f32.mrb[0].mxu0
    %293 = vdwg.mxu0
    %s294 = sld [smem:[#allocation3 + $0x3]]
    %s295 = smul.u32 %s294, 8
    %s296 = scalar_lea.vmem %s1, %s295
    %v297 = vld [vmem:[%s296] sm:$0xff]
    %v298 = vsub.f32 %v297, %v126
    %v299 = vmul.f32 %v298, %v298
    %300 = vmatprep.subr.mxu0 0.0
    %301 = vmatpush1.xpose.msra.mxu0 %v299
    %302 = vmatprep.subr.mxu0 0.0
    %303 = vmatpush1.xpose.msra.mxu0 0.0
    %304 = vmatprep.subr.mxu0 0.0
    %305 = vmatpush1.xpose.msra.mxu0 0.0
    %306 = vmatprep.subr.mxu0 0.0
    %307 = vmatpush1.xpose.msra.mxu0 0.0
    %308 = vmatprep.subr.mxu0 0.0
    %309 = vmatpush1.xpose.msra.mxu0 0.0
    %310 = vmatprep.subr.mxu0 0.0
    %311 = vmatpush1.xpose.msra.mxu0 0.0
    %312 = vmatprep.subr.mxu0 0.0
    %313 = vmatpush1.xpose.msra.mxu0 0.0
    %314 = vmatprep.subr.mxu0 0.0
    %315 = vmatpush1.xpose.msra.mxu0 0.0
    %316 = vmatprep.subr.mxu0 0.0
    %317 = vmatpush1.xpose.msra.mxu0 0.0
    %318 = vmatprep.subr.mxu0 0.0
    %319 = vmatpush1.xpose.msra.mxu0 0.0
    %320 = vmatprep.subr.mxu0 0.0
    %321 = vmatpush1.xpose.msra.mxu0 0.0
    %322 = vmatprep.subr.mxu0 0.0
    %323 = vmatpush1.xpose.msra.mxu0 0.0
    %324 = vmatprep.subr.mxu0 0.0
    %325 = vmatpush1.xpose.msra.mxu0 0.0
    %326 = vmatprep.subr.mxu0 0.0
    %327 = vmatpush1.xpose.msra.mxu0 0.0
    %328 = vmatprep.subr.mxu0 0.0
    %329 = vmatpush1.xpose.msra.mxu0 0.0
    %330 = vmatprep.subr.mxu0 0.0
    %331 = vmatpush1.xpose.msra.mxu0 0.0
    %332 = vmatprep.subr.mxu0 0.0
    %333 = vmatpush1.xpose.msra.mxu0 0.0
    %334 = vmatprep.subr.mxu0 0.0
    %335 = vmatpush1.xpose.msra.mxu0 0.0
    %336 = vmatprep.subr.mxu0 0.0
    %337 = vmatpush1.xpose.msra.mxu0 0.0
    %338 = vmatprep.subr.mxu0 0.0
    %339 = vmatpush1.xpose.msra.mxu0 0.0
    %340 = vmatprep.subr.mxu0 0.0
    %341 = vmatpush1.xpose.msra.mxu0 0.0
    %342 = vmatprep.subr.mxu0 0.0
    %343 = vmatpush1.xpose.msra.mxu0 0.0
    %344 = vmatprep.subr.mxu0 0.0
    %345 = vmatpush1.xpose.msra.mxu0 0.0
    %346 = vmatprep.subr.mxu0 0.0
    %347 = vmatpush1.xpose.msra.mxu0 0.0
    %348 = vmatprep.subr.mxu0 0.0
    %349 = vmatpush1.xpose.msra.mxu0 0.0
    %350 = vmatprep.subr.mxu0 0.0
    %351 = vmatpush1.xpose.msra.mxu0 0.0
    %352 = vmatprep.subr.mxu0 0.0
    %353 = vmatpush1.xpose.msra.mxu0 0.0
    %354 = vmatprep.subr.mxu0 0.0
    %355 = vmatpush1.xpose.msra.mxu0 0.0
    %356 = vmatprep.subr.mxu0 0.0
    %357 = vmatpush1.xpose.msra.mxu0 0.0
    %358 = vmatprep.subr.mxu0 0.0
    %359 = vmatpush1.xpose.msra.mxu0 0.0
    %360 = vmatprep.subr.mxu0 0.0
    %361 = vmatpush1.xpose.msra.mxu0 0.0
    %362 = vmatprep.subr.mxu0 0.0
    %363 = vmatpush1.xpose.msra.mxu0 0.0
    %364 = vmatprep.mubr.f32.mxu0 0.0
    %365 = vmatmul.mubr.f32.gmra.mrb[0].mxu0 1.0
    %v366 = vpop.f32.mrb[0].mxu0
    %v367 = vadd.f32 0.0, %v366
    %v368 = vpop.f32.mrb[0].mxu0
    %369 = vdwg.mxu0
    %v371 = vrot.slane %v196, 7
    %v374 = vrot.slane %v291, 6
    %v377 = vrot.slane %v367, 5
    %vm379 = vcmask 1040384
    %v380 = vsel %vm379, %v95, %v371
    %vm381 = vcmask 1041408
    %v382 = vsel %vm381, %v380, %v374
    %vm383 = vcmask 1042432
    %v384 = vsel %vm383, %v382, %v377
    %vm385 = vcmask 60416
    %386 = vst.msk [vmem:[%s2] sm:$0xf] %vm385, %v384
    %vm387 = vcmask 0
    %388 = vst.msk [vmem:[#allocation4] sm:$0x1] %vm387, %v217
    // Predicated region
    $region6: #{forward.2} parent=1 // pred_check
      _
    $region7: #{forward.2} parent=1 // pred_check_branch
      %390 = sbr.rel (0) target = $region9
    $region8: #{forward.2} parent=1 // pred_region
      _
    $region9: #{forward.2} parent=1 // pred_fallthru
      _
    // Predicated region
    $region10: #{forward.2} parent=1 // pred_check
      _
    $region11: #{forward.2} parent=1 // pred_check_branch
      %392 = sbr.rel (0) target = $region13
    $region12: #{forward.2} parent=1 // pred_region
      %s394 = ssub.s32 16, 16
      %395 = vsyncadd [#allocation5], %s394
      %s397 = sshll.u32 [#allocation4], 4
      %s398 = int_to_ptr.vmem [resolvable:$true] %s397
      %400 = dma.vmem_to_hbm [thread:$0]  %s398, 16, %s3, [#allocation5]
    $region13: #{forward.2} parent=1 // pred_fallthru
      _
    // Predicated region
    $region14: #{forward.2} parent=1 // pred_check
      _
    $region15: #{forward.2} parent=1 // pred_check_branch
      %402 = sbr.rel (0) target = $region17
    $region16: #{forward.2} parent=1 // pred_region
      _
    $region17: #{forward.2} parent=1 // pred_fallthru
      _
    // Predicated region
    $region18: #{forward.2} parent=1 // pred_check
      _
    $region19: #{forward.2} parent=1 // pred_check_branch
      %404 = sbr.rel (0) target = $region21
    $region20: #{forward.2} parent=1 // pred_region
      %405 = dma.done [#allocation5], 16
    $region21: #{forward.2} parent=1 // pred_fallthru
      _
    %406 = vsyncpa [#allocation5], 1

// kernel: forward.3
$region0: #{forward.3}
  #allocation0 [shape = 'u32[]', space=smem, size = 0x4, offset = 0x4, fixed_abs, tag = 'smem constant byte address 0x4 - core index']
  #allocation1 [shape = 'u32[144,128]{1,0:T(1,128)}', space=vmem, size = 0x12000, scoped, tag = 'internal scratch']
  #allocation2 [shape = 'f32[12,128]{1,0:T(8,128)}', space=vmem, size = 0x2000, scoped, tag = 'scratch operand']
  #allocation3 [shape = 'f32[12,12]{1,0:T(8,128)}', space=vmem, size = 0x2000, scoped, tag = 'scratch operand']
  #allocation4 [shape = 'f32[12,12]{1,0:T(8,128)}', space=vmem, size = 0x2000, scoped, tag = 'scratch operand']
  #allocation5 [shape = 'f32[12,12]{1,0:T(8,128)}', space=vmem, size = 0x2000, scoped, tag = 'scratch operand']
  #allocation6 [shape = 'f32[12,12]{1,0:T(8,128)}', space=vmem, size = 0x2000, scoped, tag = 'scratch operand']
  #allocation7 [shape = 'f32[12,12]{1,0:T(8,128)}', space=vmem, size = 0x2000, scoped, tag = 'scratch operand']
  #allocation8 [shape = 's32[1]{0}', space=sflag, size = 0x4, scoped, tag = 'scoped memory for forward.3']
  #allocation9 [shape = 'u8[512]{0}', space=smem, size = 0x200, scoped, tag = 'prefetched SMEM operand 0']
  %s0 = inlined_call_operand.vmem [shape: s32[12], index: 0, kind: input, shape index: {}]
  %s1 = inlined_call_operand.vmem [shape: f32[32,128], index: 1, kind: input, shape index: {}]
  %s2 = inlined_call_operand.vmem [shape: f32[1,2], index: 2, kind: output, shape index: {}]
  %s3 = sld [smem:[#allocation0]]
  $region14: #{forward.3} parent=0
    _
  %s5 = ssub.s32 1, %s3
  %s6 = scalar_select 0, %s5, %s3
  %s7 = sshll.u32 %s0, 4
  %s8 = int_to_ptr.vmem [resolvable:$true] %s7
  %10 = dma.vmem_to_smem %s8, 16, [#allocation9], [#allocation8]
  %11 = dma.done [#allocation8], 16
  %12 = sfence
  // Predicated region
  $region2: #{forward.3} parent=0 // pred_check
    _
  $region3: #{forward.3} parent=0 // pred_check_branch
    %14 = sbr.rel (0) target = $region5
  $region4: #{forward.3} parent=0 // pred_region
    _
  $region5: #{forward.3} parent=0 // pred_fallthru
    _
  %s15 = sld [smem:[#allocation9]]
  %s16 = scalar_lea.vmem %s1, %s15
  %v17 = vld [vmem:[%s16] sm:$0x1]
  %18 = vst [vmem:[#allocation2] sm:$0x1] %v17
  %s19 = sld [smem:[#allocation9 + $0x1]]
  %s20 = scalar_lea.vmem %s1, %s19
  %v21 = vld [vmem:[%s20] sm:$0x1]
  %22 = vst [vmem:[#allocation2 + $0x1] sm:$0x1] %v21
  %s23 = sld [smem:[#allocation9 + $0x2]]
  %s24 = scalar_lea.vmem %s1, %s23
  %v25 = vld [vmem:[%s24] sm:$0x1]
  %26 = vst [vmem:[#allocation2 + $0x2] sm:$0x1] %v25
  %s27 = sld [smem:[#allocation9 + $0x3]]
  %s28 = scalar_lea.vmem %s1, %s27
  %v29 = vld [vmem:[%s28] sm:$0x1]
  %30 = vst [vmem:[#allocation2 + $0x3] sm:$0x1] %v29
  %s31 = sld [smem:[#allocation9 + $0x4]]
  %s32 = scalar_lea.vmem %s1, %s31
  %v33 = vld [vmem:[%s32] sm:$0x1]
  %34 = vst [vmem:[#allocation2 + $0x4] sm:$0x1] %v33
  %s35 = sld [smem:[#allocation9 + $0x5]]
  %s36 = scalar_lea.vmem %s1, %s35
  %v37 = vld [vmem:[%s36] sm:$0x1]
  %38 = vst [vmem:[#allocation2 + $0x5] sm:$0x1] %v37
  %s39 = sld [smem:[#allocation9 + $0x6]]
  %s40 = scalar_lea.vmem %s1, %s39
  %v41 = vld [vmem:[%s40] sm:$0x1]
  %42 = vst [vmem:[#allocation2 + $0x6] sm:$0x1] %v41
  %s43 = sld [smem:[#allocation9 + $0x7]]
  %s44 = scalar_lea.vmem %s1, %s43
  %v45 = vld [vmem:[%s44] sm:$0x1]
  %46 = vst [vmem:[#allocation2 + $0x7] sm:$0x1] %v45
  %s47 = sld [smem:[#allocation9 + $0x8]]
  %s48 = scalar_lea.vmem %s1, %s47
  %v49 = vld [vmem:[%s48] sm:$0x1]
  %50 = vst [vmem:[#allocation2 + $0x8] sm:$0x1] %v49
  %s51 = sld [smem:[#allocation9 + $0x9]]
  %s52 = scalar_lea.vmem %s1, %s51
  %v53 = vld [vmem:[%s52] sm:$0x1]
  %54 = vst [vmem:[#allocation2 + $0x9] sm:$0x1] %v53
  %s55 = sld [smem:[#allocation9 + $0xa]]
  %s56 = scalar_lea.vmem %s1, %s55
  %v57 = vld [vmem:[%s56] sm:$0x1]
  %58 = vst [vmem:[#allocation2 + $0xa] sm:$0x1] %v57
  %s59 = sld [smem:[#allocation9 + $0xb]]
  %s60 = scalar_lea.vmem %s1, %s59
  %v61 = vld [vmem:[%s60] sm:$0x1]
  %62 = vst [vmem:[#allocation2 + $0xb] sm:$0x1] %v61
  %v63 = vld [vmem:[#allocation2] sm:$0xff]
  %v64 = vld [vmem:[#allocation2 + $0x8] sm:$0xf]
  %v65 = vmul.f32 %v63, %v63
  %v66 = vmul.f32 %v64, %v64
  %67 = vadd.xlane.f32.xlu0 %v65
  %v68 = vpop.xlane.xlu0 %67
  %vm69 = vcmask 1043456
  %v70 = vsel %vm69, %v66, 0.0
  %71 = vadd.xlane.f32.xlu0 %v70
  %v72 = vpop.xlane.xlu0 %71
  %v73 = vmax.f32 %v68, 1e-24
  %v74 = vmax.f32 %v72, 1e-24
  %v75 = vrsqrt.pop %v73
  %v76 = vrsqrt.pop %v74
  %v77 = vmul.f32 %v63, %v75
  %v78 = vmul.f32 %v64, %v76
  %79 = vmatprep.subr.mxu0 0.0
  %80 = vmatpush1.xpose.msra.mxu0 %v77
  %81 = vmatprep.subr.mxu0 0.0
  %82 = vmatpush1.xpose.msra.mxu0 %v78
  %83 = vmatprep.subr.mxu0 0.0
  %84 = vmatpush1.xpose.msra.mxu0 0.0
  %85 = vmatprep.subr.mxu0 0.0
  %86 = vmatpush1.xpose.msra.mxu0 0.0
  %87 = vmatprep.subr.mxu0 0.0
  %88 = vmatpush1.xpose.msra.mxu0 0.0
  %89 = vmatprep.subr.mxu0 0.0
  %90 = vmatpush1.xpose.msra.mxu0 0.0
  %91 = vmatprep.subr.mxu0 0.0
  %92 = vmatpush1.xpose.msra.mxu0 0.0
  %93 = vmatprep.subr.mxu0 0.0
  %94 = vmatpush1.xpose.msra.mxu0 0.0
  %95 = vmatprep.subr.mxu0 0.0
  %96 = vmatpush1.xpose.msra.mxu0 0.0
  %97 = vmatprep.subr.mxu0 0.0
  %98 = vmatpush1.xpose.msra.mxu0 0.0
  %99 = vmatprep.subr.mxu0 0.0
  %100 = vmatpush1.xpose.msra.mxu0 0.0
  %101 = vmatprep.subr.mxu0 0.0
  %102 = vmatpush1.xpose.msra.mxu0 0.0
  %103 = vmatprep.subr.mxu0 0.0
  %104 = vmatpush1.xpose.msra.mxu0 0.0
  %105 = vmatprep.subr.mxu0 0.0
  %106 = vmatpush1.xpose.msra.mxu0 0.0
  %107 = vmatprep.subr.mxu0 0.0
  %108 = vmatpush1.xpose.msra.mxu0 0.0
  %109 = vmatprep.subr.mxu0 0.0
  %110 = vmatpush1.xpose.msra.mxu0 0.0
  %111 = vmatprep.subr.mxu0 0.0
  %112 = vmatpush1.xpose.msra.mxu0 0.0
  %113 = vmatprep.subr.mxu0 0.0
  %114 = vmatpush1.xpose.msra.mxu0 0.0
  %115 = vmatprep.subr.mxu0 0.0
  %116 = vmatpush1.xpose.msra.mxu0 0.0
  %117 = vmatprep.subr.mxu0 0.0
  %118 = vmatpush1.xpose.msra.mxu0 0.0
  %119 = vmatprep.subr.mxu0 0.0
  %120 = vmatpush1.xpose.msra.mxu0 0.0
  %121 = vmatprep.subr.mxu0 0.0
  %122 = vmatpush1.xpose.msra.mxu0 0.0
  %123 = vmatprep.subr.mxu0 0.0
  %124 = vmatpush1.xpose.msra.mxu0 0.0
  %125 = vmatprep.subr.mxu0 0.0
  %126 = vmatpush1.xpose.msra.mxu0 0.0
  %127 = vmatprep.subr.mxu0 0.0
  %128 = vmatpush1.xpose.msra.mxu0 0.0
  %129 = vmatprep.subr.mxu0 0.0
  %130 = vmatpush1.xpose.msra.mxu0 0.0
  %131 = vmatprep.subr.mxu0 0.0
  %132 = vmatpush1.xpose.msra.mxu0 0.0
  %133 = vmatprep.subr.mxu0 0.0
  %134 = vmatpush1.xpose.msra.mxu0 0.0
  %135 = vmatprep.subr.mxu0 0.0
  %136 = vmatpush1.xpose.msra.mxu0 0.0
  %137 = vmatprep.subr.mxu0 0.0
  %138 = vmatpush1.xpose.msra.mxu0 0.0
  %139 = vmatprep.subr.mxu0 0.0
  %140 = vmatpush1.xpose.msra.mxu0 0.0
  %141 = vmatprep.subr.mxu0 0.0
  %142 = vmatpush1.xpose.msra.mxu0 0.0
  %143 = vmatprep.mubr.f32.mxu0 0.0
  %144 = vmatmul.mubr.f32.gmra.mrb[0].mxu0 %v77
  %v145 = vpop.f32.mrb[0].mxu0
  %v146 = vadd.f32 0.0, %v145
  %v147 = vpop.f32.mrb[0].mxu0
  %148 = vmatprep.mubr.f32.mxu0 0.0
  %149 = vmatmul.mubr.f32.gmra.mrb[0].mxu0 %v78
  %v150 = vpop.f32.mrb[0].mxu0
  %v151 = vadd.f32 0.0, %v150
  %v152 = vpop.f32.mrb[0].mxu0
  %153 = vdwg.mxu0
  %v154 = vmul.f32 %v146, 2.0
  %v155 = vmul.f32 %v151, 2.0
  %v156 = vsub.f32 2.0, %v154
  %v157 = vsub.f32 2.0, %v155
  %v158 = vmax.f32 %v156, 0.0
  %v159 = vmax.f32 %v157, 0.0
  %v160 = vrsqrt.pop %v158
  %v161 = vmul.f32 %v158, %v160
  %vm162 = vcmp.eq.f32.partialorder %v158, inf
  %v163 = vsel %vm162, %v158, %v161
  %vm164 = vcmp.eq.f32.partialorder %v158, 0.0
  %v165 = vand.u32 %v158, 2147483648
  %v166 = vsel %vm164, %v165, %v163
  %v167 = vrsqrt.pop %v159
  %v168 = vmul.f32 %v159, %v167
  %vm169 = vcmp.eq.f32.partialorder %v159, inf
  %v170 = vsel %vm169, %v159, %v168
  %vm171 = vcmp.eq.f32.partialorder %v159, 0.0
  %v172 = vand.u32 %v159, 2147483648
  %v173 = vsel %vm171, %v172, %v170
  %v174 = vlaneseq
  %v175 = vshrl.u32 %v174, 7
  %v176 = vadd.s32 %v175, 8
  %v177 = vlaneseq
  %v178 = vand.u32 %v177, 127
  %vm179 = vcmp.lt.s32.totalorder %v175, 6
  %vm180 = vcmp.lt.s32.totalorder %v176, 6
  %vm181 = vcmp.lt.s32.totalorder %v178, 6
  %vm182 = vmxor %vm179, %vm181
  %vm183 = vmxor %vm180, %vm181
  %vm184 = vmxor %vm182, 1
  %vm185 = vmxor %vm183, 1
  %vm186 = vcmp.eq.s32.totalorder %v175, %v178
  %vm187 = vcmp.eq.s32.totalorder %v176, %v178
  %vm188 = vmxor %vm186, 1
  %vm189 = vmxor %vm187, 1
  %vm190 = vmand %vm184, %vm188
  %vm191 = vmand %vm185, %vm189
  %v192 = vsel %vm182, %v146, -1e+30
  %v193 = vsel %vm183, %v151, -1e+30
  %vm194 = vcmask 97280
  %v195 = vsel %vm194, %v192, -inf
  %vm196 = vcmask 93184
  %v197 = vsel %vm196, %v193, -inf
  %v198 = vmax.f32 %v195, %v197
  %v199 = vrot.slane %v198, 4
  %v200 = vmax.f32 %v198, %v199
  %v201 = vrot.slane %v200, 2
  %v202 = vmax.f32 %v200, %v201
  %v203 = vrot.slane %v202, 1
  %v204 = vmax.f32 %v202, %v203
  %v205 = vsel %vm190, %v146, 1e+30
  %v206 = vsel %vm191, %v151, 1e+30
  %v207 = vsel %vm194, %v205, inf
  %v208 = vsel %vm196, %v206, inf
  %v209 = vmin.f32 %v207, %v208
  %v210 = vrot.slane %v209, 4
  %v211 = vmin.f32 %v209, %v210
  %v212 = vrot.slane %v211, 2
  %v213 = vmin.f32 %v211, %v212
  %v214 = vrot.slane %v213, 1
  %v215 = vmin.f32 %v213, %v214
  %v216 = vsub.f32 %v146, 0.1
  %v217 = vsub.f32 %v151, 0.1
  %vm218 = vcmp.lt.f32.partialorder %v216, %v204
  %vm219 = vcmp.lt.f32.partialorder %v217, %v204
  %vm220 = vmand %vm190, %vm218
  %vm221 = vmand %vm191, %vm219
  %v222 = vadd.f32 %v146, 0.1
  %v223 = vadd.f32 %v151, 0.1
  %vm224 = vcmp.gt.f32.partialorder %v222, %v215
  %vm225 = vcmp.gt.f32.partialorder %v223, %v215
  %vm226 = vmand %vm182, %vm224
  %vm227 = vmand %vm183, %vm225
  %228 = vst.msk [vmem:[#allocation3] sm:$0xff] %vm194, %v166
  %229 = vst.msk [vmem:[#allocation3 + $0x8] sm:$0xf] %vm196, %v173
  %v230 = vsel %vm220, 1, 0
  %v231 = vsel %vm221, 1, 0
  %v232 = vcvt.s32.f32 %v230
  %v233 = vcvt.s32.f32 %v231
  %234 = vst.msk [vmem:[#allocation4] sm:$0xff] %vm194, %v232
  %235 = vst.msk [vmem:[#allocation4 + $0x8] sm:$0xf] %vm196, %v233
  %v236 = vsel %vm226, 1, 0
  %v237 = vsel %vm227, 1, 0
  %v238 = vcvt.s32.f32 %v236
  %v239 = vcvt.s32.f32 %v237
  %240 = vst.msk [vmem:[#allocation5] sm:$0xff] %vm194, %v238
  %241 = vst.msk [vmem:[#allocation5 + $0x8] sm:$0xf] %vm196, %v239
  %242 = vst.msk [vmem:[#allocation6] sm:$0xff] %vm194, 0.0
  %243 = vst.msk [vmem:[#allocation6 + $0x8] sm:$0xf] %vm196, 0.0
  %244 = vst.msk [vmem:[#allocation7] sm:$0xff] %vm194, 0.0
  %245 = vst.msk [vmem:[#allocation7 + $0x8] sm:$0xf] %vm196, 0.0
  %v246 = vld [vmem:[#allocation3] sm:$0x1]
  %v247 = vld [vmem:[#allocation4] sm:$0x1]
  %v248 = vld [vmem:[#allocation3] sm:$0xff]
  %v249 = vld [vmem:[#allocation3 + $0x8] sm:$0xf]
  %v250 = vld [vmem:[#allocation5] sm:$0xff]
  %v251 = vld [vmem:[#allocation5 + $0x8] sm:$0xf]
  %v252 = vlaneseq
  %v253 = vshrl.u32 %v252, 7
  %v254 = vsub.s32 0, %v253
  %v255 = vrot.slane %v246, %v254
  %v256 = vsub.f32 %v255, %v248
  %v257 = vsub.f32 %v255, %v249
  %v258 = vadd.f32 %v256, 0.05
  %v259 = vadd.f32 %v257, 0.05
  %v260 = vlaneseq
  %v261 = vshrl.u32 %v260, 7
  %v262 = vsub.s32 0, %v261
  %v263 = vrot.slane %v247, %v262
  %v264 = vmul.f32 %v263, %v250
  %v265 = vmul.f32 %v263, %v251
  %vm266 = vcmp.gt.f32.partialorder %v264, 0.0
  %vm267 = vcmp.gt.f32.partialorder %v265, 0.0
  %vm268 = vcmp.gt.f32.partialorder %v258, 0.0
  %vm269 = vcmp.gt.f32.partialorder %v259, 0.0
  %vm270 = vmand %vm266, %vm268
  %vm271 = vmand %vm267, %vm269
  %v272 = vld [vmem:[#allocation6] sm:$0xff]
  %v273 = vld [vmem:[#allocation6 + $0x8] sm:$0xf]
  %v274 = vsel %vm270, %v258, 0.0
  %v275 = vsel %vm271, %v259, 0.0
  %v276 = vadd.f32 %v272, %v274
  %v277 = vadd.f32 %v273, %v275
  %278 = vst.msk [vmem:[#allocation6] sm:$0xff] %vm194, %v276
  %279 = vst.msk [vmem:[#allocation6 + $0x8] sm:$0xf] %vm196, %v277
  %v280 = vld [vmem:[#allocation7] sm:$0xff]
  %v281 = vld [vmem:[#allocation7 + $0x8] sm:$0xf]
  %v282 = vsel %vm270, 1, 0
  %v283 = vsel %vm271, 1, 0
  %v284 = vcvt.s32.f32 %v282
  %v285 = vcvt.s32.f32 %v283
  %v286 = vadd.f32 %v280, %v284
  %v287 = vadd.f32 %v281, %v285
  %288 = vst.msk [vmem:[#allocation7] sm:$0xff] %vm194, %v286
  %289 = vst.msk [vmem:[#allocation7 + $0x8] sm:$0xf] %vm196, %v287
  %v290 = vld [vmem:[#allocation3 + $0x1] sm:$0x1]
  %v291 = vld [vmem:[#allocation4 + $0x1] sm:$0x1]
  %v292 = vld [vmem:[#allocation3] sm:$0xff]
  %v293 = vld [vmem:[#allocation3 + $0x8] sm:$0xf]
  %v294 = vld [vmem:[#allocation5] sm:$0xff]
  %v295 = vld [vmem:[#allocation5 + $0x8] sm:$0xf]
  %v296 = vlaneseq
  %v297 = vshrl.u32 %v296, 7
  %v298 = vsub.s32 0, %v297
  %v299 = vrot.slane %v290, %v298
  %v300 = vsub.f32 %v299, %v292
  %v301 = vsub.f32 %v299, %v293
  %v302 = vadd.f32 %v300, 0.05
  %v303 = vadd.f32 %v301, 0.05
  %v304 = vlaneseq
  %v305 = vshrl.u32 %v304, 7
  %v306 = vsub.s32 0, %v305
  %v307 = vrot.slane %v291, %v306
  %v308 = vmul.f32 %v307, %v294
  %v309 = vmul.f32 %v307, %v295
  %vm310 = vcmp.gt.f32.partialorder %v308, 0.0
  %vm311 = vcmp.gt.f32.partialorder %v309, 0.0
  %vm312 = vcmp.gt.f32.partialorder %v302, 0.0
  %vm313 = vcmp.gt.f32.partialorder %v303, 0.0
  %vm314 = vmand %vm310, %vm312
  %vm315 = vmand %vm311, %vm313
  %v316 = vld [vmem:[#allocation6] sm:$0xff]
  %v317 = vld [vmem:[#allocation6 + $0x8] sm:$0xf]
  %v318 = vsel %vm314, %v302, 0.0
  %v319 = vsel %vm315, %v303, 0.0
  %v320 = vadd.f32 %v316, %v318
  %v321 = vadd.f32 %v317, %v319
  %322 = vst.msk [vmem:[#allocation6] sm:$0xff] %vm194, %v320
  %323 = vst.msk [vmem:[#allocation6 + $0x8] sm:$0xf] %vm196, %v321
  %v324 = vld [vmem:[#allocation7] sm:$0xff]
  %v325 = vld [vmem:[#allocation7 + $0x8] sm:$0xf]
  %v326 = vsel %vm314, 1, 0
  %v327 = vsel %vm315, 1, 0
  %v328 = vcvt.s32.f32 %v326
  %v329 = vcvt.s32.f32 %v327
  %v330 = vadd.f32 %v324, %v328
  %v331 = vadd.f32 %v325, %v329
  %332 = vst.msk [vmem:[#allocation7] sm:$0xff] %vm194, %v330
  %333 = vst.msk [vmem:[#allocation7 + $0x8] sm:$0xf] %vm196, %v331
  %v334 = vld [vmem:[#allocation3 + $0x2] sm:$0x1]
  %v335 = vld [vmem:[#allocation4 + $0x2] sm:$0x1]
  %v336 = vld [vmem:[#allocation3] sm:$0xff]
  %v337 = vld [vmem:[#allocation3 + $0x8] sm:$0xf]
  %v338 = vld [vmem:[#allocation5] sm:$0xff]
  %v339 = vld [vmem:[#allocation5 + $0x8] sm:$0xf]
  %v340 = vlaneseq
  %v341 = vshrl.u32 %v340, 7
  %v342 = vsub.s32 0, %v341
  %v343 = vrot.slane %v334, %v342
  %v344 = vsub.f32 %v343, %v336
  %v345 = vsub.f32 %v343, %v337
  %v346 = vadd.f32 %v344, 0.05
  %v347 = vadd.f32 %v345, 0.05
  %v348 = vlaneseq
  %v349 = vshrl.u32 %v348, 7
  %v350 = vsub.s32 0, %v349
  %v351 = vrot.slane %v335, %v350
  %v352 = vmul.f32 %v351, %v338
  %v353 = vmul.f32 %v351, %v339
  %vm354 = vcmp.gt.f32.partialorder %v352, 0.0
  %vm355 = vcmp.gt.f32.partialorder %v353, 0.0
  %vm356 = vcmp.gt.f32.partialorder %v346, 0.0
  %vm357 = vcmp.gt.f32.partialorder %v347, 0.0
  %vm358 = vmand %vm354, %vm356
  %vm359 = vmand %vm355, %vm357
  %v360 = vld [vmem:[#allocation6] sm:$0xff]
  %v361 = vld [vmem:[#allocation6 + $0x8] sm:$0xf]
  %v362 = vsel %vm358, %v346, 0.0
  %v363 = vsel %vm359, %v347, 0.0
  %v364 = vadd.f32 %v360, %v362
  %v365 = vadd.f32 %v361, %v363
  %366 = vst.msk [vmem:[#allocation6] sm:$0xff] %vm194, %v364
  %367 = vst.msk [vmem:[#allocation6 + $0x8] sm:$0xf] %vm196, %v365
  %v368 = vld [vmem:[#allocation7] sm:$0xff]
  %v369 = vld [vmem:[#allocation7 + $0x8] sm:$0xf]
  %v370 = vsel %vm358, 1, 0
  %v371 = vsel %vm359, 1, 0
  %v372 = vcvt.s32.f32 %v370
  %v373 = vcvt.s32.f32 %v371
  %v374 = vadd.f32 %v368, %v372
  %v375 = vadd.f32 %v369, %v373
  %376 = vst.msk [vmem:[#allocation7] sm:$0xff] %vm194, %v374
  %377 = vst.msk [vmem:[#allocation7 + $0x8] sm:$0xf] %vm196, %v375
  %v378 = vld [vmem:[#allocation3 + $0x3] sm:$0x1]
  %v379 = vld [vmem:[#allocation4 + $0x3] sm:$0x1]
  %v380 = vld [vmem:[#allocation3] sm:$0xff]
  %v381 = vld [vmem:[#allocation3 + $0x8] sm:$0xf]
  %v382 = vld [vmem:[#allocation5] sm:$0xff]
  %v383 = vld [vmem:[#allocation5 + $0x8] sm:$0xf]
  %v384 = vlaneseq
  %v385 = vshrl.u32 %v384, 7
  %v386 = vsub.s32 0, %v385
  %v387 = vrot.slane %v378, %v386
  %v388 = vsub.f32 %v387, %v380
  %v389 = vsub.f32 %v387, %v381
  %v390 = vadd.f32 %v388, 0.05
  %v391 = vadd.f32 %v389, 0.05
  %v392 = vlaneseq
  %v393 = vshrl.u32 %v392, 7
  %v394 = vsub.s32 0, %v393
  %v395 = vrot.slane %v379, %v394
  %v396 = vmul.f32 %v395, %v382
  %v397 = vmul.f32 %v395, %v383
  %vm398 = vcmp.gt.f32.partialorder %v396, 0.0
  %vm399 = vcmp.gt.f32.partialorder %v397, 0.0
  %vm400 = vcmp.gt.f32.partialorder %v390, 0.0
  %vm401 = vcmp.gt.f32.partialorder %v391, 0.0
  %vm402 = vmand %vm398, %vm400
  %vm403 = vmand %vm399, %vm401
  %v404 = vld [vmem:[#allocation6] sm:$0xff]
  %v405 = vld [vmem:[#allocation6 + $0x8] sm:$0xf]
  %v406 = vsel %vm402, %v390, 0.0
  %v407 = vsel %vm403, %v391, 0.0
  %v408 = vadd.f32 %v404, %v406
  %v409 = vadd.f32 %v405, %v407
  %410 = vst.msk [vmem:[#allocation6] sm:$0xff] %vm194, %v408
  %411 = vst.msk [vmem:[#allocation6 + $0x8] sm:$0xf] %vm196, %v409
  %v412 = vld [vmem:[#allocation7] sm:$0xff]
  %v413 = vld [vmem:[#allocation7 + $0x8] sm:$0xf]
  %v414 = vsel %vm402, 1, 0
  %v415 = vsel %vm403, 1, 0
  %v416 = vcvt.s32.f32 %v414
  %v417 = vcvt.s32.f32 %v415
  %v418 = vadd.f32 %v412, %v416
  %v419 = vadd.f32 %v413, %v417
  %420 = vst.msk [vmem:[#allocation7] sm:$0xff] %vm194, %v418
  %421 = vst.msk [vmem:[#allocation7 + $0x8] sm:$0xf] %vm196, %v419
  %v422 = vld [vmem:[#allocation3 + $0x4] sm:$0x1]
  %v423 = vld [vmem:[#allocation4 + $0x4] sm:$0x1]
  %v424 = vld [vmem:[#allocation3] sm:$0xff]
  %v425 = vld [vmem:[#allocation3 + $0x8] sm:$0xf]
  %v426 = vld [vmem:[#allocation5] sm:$0xff]
  %v427 = vld [vmem:[#allocation5 + $0x8] sm:$0xf]
  %v428 = vlaneseq
  %v429 = vshrl.u32 %v428, 7
  %v430 = vsub.s32 0, %v429
  %v431 = vrot.slane %v422, %v430
  %v432 = vsub.f32 %v431, %v424
  %v433 = vsub.f32 %v431, %v425
  %v434 = vadd.f32 %v432, 0.05
  %v435 = vadd.f32 %v433, 0.05
  %v436 = vlaneseq
  %v437 = vshrl.u32 %v436, 7
  %v438 = vsub.s32 0, %v437
  %v439 = vrot.slane %v423, %v438
  %v440 = vmul.f32 %v439, %v426
  %v441 = vmul.f32 %v439, %v427
  %vm442 = vcmp.gt.f32.partialorder %v440, 0.0
  %vm443 = vcmp.gt.f32.partialorder %v441, 0.0
  %vm444 = vcmp.gt.f32.partialorder %v434, 0.0
  %vm445 = vcmp.gt.f32.partialorder %v435, 0.0
  %vm446 = vmand %vm442, %vm444
  %vm447 = vmand %vm443, %vm445
  %v448 = vld [vmem:[#allocation6] sm:$0xff]
  %v449 = vld [vmem:[#allocation6 + $0x8] sm:$0xf]
  %v450 = vsel %vm446, %v434, 0.0
  %v451 = vsel %vm447, %v435, 0.0
  %v452 = vadd.f32 %v448, %v450
  %v453 = vadd.f32 %v449, %v451
  %454 = vst.msk [vmem:[#allocation6] sm:$0xff] %vm194, %v452
  %455 = vst.msk [vmem:[#allocation6 + $0x8] sm:$0xf] %vm196, %v453
  %v456 = vld [vmem:[#allocation7] sm:$0xff]
  %v457 = vld [vmem:[#allocation7 + $0x8] sm:$0xf]
  %v458 = vsel %vm446, 1, 0
  %v459 = vsel %vm447, 1, 0
  %v460 = vcvt.s32.f32 %v458
  %v461 = vcvt.s32.f32 %v459
  %v462 = vadd.f32 %v456, %v460
  %v463 = vadd.f32 %v457, %v461
  %464 = vst.msk [vmem:[#allocation7] sm:$0xff] %vm194, %v462
  %465 = vst.msk [vmem:[#allocation7 + $0x8] sm:$0xf] %vm196, %v463
  %v466 = vld [vmem:[#allocation3 + $0x5] sm:$0x1]
  %v467 = vld [vmem:[#allocation4 + $0x5] sm:$0x1]
  %v468 = vld [vmem:[#allocation3] sm:$0xff]
  %v469 = vld [vmem:[#allocation3 + $0x8] sm:$0xf]
  %v470 = vld [vmem:[#allocation5] sm:$0xff]
  %v471 = vld [vmem:[#allocation5 + $0x8] sm:$0xf]
  %v472 = vlaneseq
  %v473 = vshrl.u32 %v472, 7
  %v474 = vsub.s32 0, %v473
  %v475 = vrot.slane %v466, %v474
  %v476 = vsub.f32 %v475, %v468
  %v477 = vsub.f32 %v475, %v469
  %v478 = vadd.f32 %v476, 0.05
  %v479 = vadd.f32 %v477, 0.05
  %v480 = vlaneseq
  %v481 = vshrl.u32 %v480, 7
  %v482 = vsub.s32 0, %v481
  %v483 = vrot.slane %v467, %v482
  %v484 = vmul.f32 %v483, %v470
  %v485 = vmul.f32 %v483, %v471
  %vm486 = vcmp.gt.f32.partialorder %v484, 0.0
  %vm487 = vcmp.gt.f32.partialorder %v485, 0.0
  %vm488 = vcmp.gt.f32.partialorder %v478, 0.0
  %vm489 = vcmp.gt.f32.partialorder %v479, 0.0
  %vm490 = vmand %vm486, %vm488
  %vm491 = vmand %vm487, %vm489
  %v492 = vld [vmem:[#allocation6] sm:$0xff]
  %v493 = vld [vmem:[#allocation6 + $0x8] sm:$0xf]
  %v494 = vsel %vm490, %v478, 0.0
  %v495 = vsel %vm491, %v479, 0.0
  %v496 = vadd.f32 %v492, %v494
  %v497 = vadd.f32 %v493, %v495
  %498 = vst.msk [vmem:[#allocation6] sm:$0xff] %vm194, %v496
  %499 = vst.msk [vmem:[#allocation6 + $0x8] sm:$0xf] %vm196, %v497
  %v500 = vld [vmem:[#allocation7] sm:$0xff]
  %v501 = vld [vmem:[#allocation7 + $0x8] sm:$0xf]
  %v502 = vsel %vm490, 1, 0
  %v503 = vsel %vm491, 1, 0
  %v504 = vcvt.s32.f32 %v502
  %v505 = vcvt.s32.f32 %v503
  %v506 = vadd.f32 %v500, %v504
  %v507 = vadd.f32 %v501, %v505
  %508 = vst.msk [vmem:[#allocation7] sm:$0xff] %vm194, %v506
  %509 = vst.msk [vmem:[#allocation7 + $0x8] sm:$0xf] %vm196, %v507
  %v510 = vld [vmem:[#allocation3 + $0x6] sm:$0x1]
  %v511 = vld [vmem:[#allocation4 + $0x6] sm:$0x1]
  %v512 = vld [vmem:[#allocation3] sm:$0xff]
  %v513 = vld [vmem:[#allocation3 + $0x8] sm:$0xf]
  %v514 = vld [vmem:[#allocation5] sm:$0xff]
  %v515 = vld [vmem:[#allocation5 + $0x8] sm:$0xf]
  %v516 = vlaneseq
  %v517 = vshrl.u32 %v516, 7
  %v518 = vsub.s32 0, %v517
  %v519 = vrot.slane %v510, %v518
  %v520 = vsub.f32 %v519, %v512
  %v521 = vsub.f32 %v519, %v513
  %v522 = vadd.f32 %v520, 0.05
  %v523 = vadd.f32 %v521, 0.05
  %v524 = vlaneseq
  %v525 = vshrl.u32 %v524, 7
  %v526 = vsub.s32 0, %v525
  %v527 = vrot.slane %v511, %v526
  %v528 = vmul.f32 %v527, %v514
  %v529 = vmul.f32 %v527, %v515
  %vm530 = vcmp.gt.f32.partialorder %v528, 0.0
  %vm531 = vcmp.gt.f32.partialorder %v529, 0.0
  %vm532 = vcmp.gt.f32.partialorder %v522, 0.0
  %vm533 = vcmp.gt.f32.partialorder %v523, 0.0
  %vm534 = vmand %vm530, %vm532
  %vm535 = vmand %vm531, %vm533
  %v536 = vld [vmem:[#allocation6] sm:$0xff]
  %v537 = vld [vmem:[#allocation6 + $0x8] sm:$0xf]
  %v538 = vsel %vm534, %v522, 0.0
  %v539 = vsel %vm535, %v523, 0.0
  %v540 = vadd.f32 %v536, %v538
  %v541 = vadd.f32 %v537, %v539
  %542 = vst.msk [vmem:[#allocation6] sm:$0xff] %vm194, %v540
  %543 = vst.msk [vmem:[#allocation6 + $0x8] sm:$0xf] %vm196, %v541
  %v544 = vld [vmem:[#allocation7] sm:$0xff]
  %v545 = vld [vmem:[#allocation7 + $0x8] sm:$0xf]
  %v546 = vsel %vm534, 1, 0
  %v547 = vsel %vm535, 1, 0
  %v548 = vcvt.s32.f32 %v546
  %v549 = vcvt.s32.f32 %v547
  %v550 = vadd.f32 %v544, %v548
  %v551 = vadd.f32 %v545, %v549
  %552 = vst.msk [vmem:[#allocation7] sm:$0xff] %vm194, %v550
  %553 = vst.msk [vmem:[#allocation7 + $0x8] sm:$0xf] %vm196, %v551
  %v554 = vld [vmem:[#allocation3 + $0x7] sm:$0x1]
  %v555 = vld [vmem:[#allocation4 + $0x7] sm:$0x1]
  %v556 = vld [vmem:[#allocation3] sm:$0xff]
  %v557 = vld [vmem:[#allocation3 + $0x8] sm:$0xf]
  %v558 = vld [vmem:[#allocation5] sm:$0xff]
  %v559 = vld [vmem:[#allocation5 + $0x8] sm:$0xf]
  %v560 = vlaneseq
  %v561 = vshrl.u32 %v560, 7
  %v562 = vsub.s32 0, %v561
  %v563 = vrot.slane %v554, %v562
  %v564 = vsub.f32 %v563, %v556
  %v565 = vsub.f32 %v563, %v557
  %v566 = vadd.f32 %v564, 0.05
  %v567 = vadd.f32 %v565, 0.05
  %v568 = vlaneseq
  %v569 = vshrl.u32 %v568, 7
  %v570 = vsub.s32 0, %v569
  %v571 = vrot.slane %v555, %v570
  %v572 = vmul.f32 %v571, %v558
  %v573 = vmul.f32 %v571, %v559
  %vm574 = vcmp.gt.f32.partialorder %v572, 0.0
  %vm575 = vcmp.gt.f32.partialorder %v573, 0.0
  %vm576 = vcmp.gt.f32.partialorder %v566, 0.0
  %vm577 = vcmp.gt.f32.partialorder %v567, 0.0
  %vm578 = vmand %vm574, %vm576
  %vm579 = vmand %vm575, %vm577
  %v580 = vld [vmem:[#allocation6] sm:$0xff]
  %v581 = vld [vmem:[#allocation6 + $0x8] sm:$0xf]
  %v582 = vsel %vm578, %v566, 0.0
  %v583 = vsel %vm579, %v567, 0.0
  %v584 = vadd.f32 %v580, %v582
  %v585 = vadd.f32 %v581, %v583
  %586 = vst.msk [vmem:[#allocation6] sm:$0xff] %vm194, %v584
  %587 = vst.msk [vmem:[#allocation6 + $0x8] sm:$0xf] %vm196, %v585
  %v588 = vld [vmem:[#allocation7] sm:$0xff]
  %v589 = vld [vmem:[#allocation7 + $0x8] sm:$0xf]
  %v590 = vsel %vm578, 1, 0
  %v591 = vsel %vm579, 1, 0
  %v592 = vcvt.s32.f32 %v590
  %v593 = vcvt.s32.f32 %v591
  %v594 = vadd.f32 %v588, %v592
  %v595 = vadd.f32 %v589, %v593
  %596 = vst.msk [vmem:[#allocation7] sm:$0xff] %vm194, %v594
  %597 = vst.msk [vmem:[#allocation7 + $0x8] sm:$0xf] %vm196, %v595
  %v598 = vld [vmem:[#allocation3 + $0x8] sm:$0x1]
  %v599 = vld [vmem:[#allocation4 + $0x8] sm:$0x1]
  %v600 = vld [vmem:[#allocation3] sm:$0xff]
  %v601 = vld [vmem:[#allocation3 + $0x8] sm:$0xf]
  %v602 = vld [vmem:[#allocation5] sm:$0xff]
  %v603 = vld [vmem:[#allocation5 + $0x8] sm:$0xf]
  %v604 = vlaneseq
  %v605 = vshrl.u32 %v604, 7
  %v606 = vsub.s32 0, %v605
  %v607 = vrot.slane %v598, %v606
  %v608 = vsub.f32 %v607, %v600
  %v609 = vsub.f32 %v607, %v601
  %v610 = vadd.f32 %v608, 0.05
  %v611 = vadd.f32 %v609, 0.05
  %v612 = vlaneseq
  %v613 = vshrl.u32 %v612, 7
  %v614 = vsub.s32 0, %v613
  %v615 = vrot.slane %v599, %v614
  %v616 = vmul.f32 %v615, %v602
  %v617 = vmul.f32 %v615, %v603
  %vm618 = vcmp.gt.f32.partialorder %v616, 0.0
  %vm619 = vcmp.gt.f32.partialorder %v617, 0.0
  %vm620 = vcmp.gt.f32.partialorder %v610, 0.0
  %vm621 = vcmp.gt.f32.partialorder %v611, 0.0
  %vm622 = vmand %vm618, %vm620
  %vm623 = vmand %vm619, %vm621
  %v624 = vld [vmem:[#allocation6] sm:$0xff]
  %v625 = vld [vmem:[#allocation6 + $0x8] sm:$0xf]
  %v626 = vsel %vm622, %v610, 0.0
  %v627 = vsel %vm623, %v611, 0.0
  %v628 = vadd.f32 %v624, %v626
  %v629 = vadd.f32 %v625, %v627
  %630 = vst.msk [vmem:[#allocation6] sm:$0xff] %vm194, %v628
  %631 = vst.msk [vmem:[#allocation6 + $0x8] sm:$0xf] %vm196, %v629
  %v632 = vld [vmem:[#allocation7] sm:$0xff]
  %v633 = vld [vmem:[#allocation7 + $0x8] sm:$0xf]
  %v634 = vsel %vm622, 1, 0
  %v635 = vsel %vm623, 1, 0
  %v636 = vcvt.s32.f32 %v634
  %v637 = vcvt.s32.f32 %v635
  %v638 = vadd.f32 %v632, %v636
  %v639 = vadd.f32 %v633, %v637
  %640 = vst.msk [vmem:[#allocation7] sm:$0xff] %vm194, %v638
  %641 = vst.msk [vmem:[#allocation7 + $0x8] sm:$0xf] %vm196, %v639
  %v642 = vld [vmem:[#allocation3 + $0x9] sm:$0x1]
  %v643 = vld [vmem:[#allocation4 + $0x9] sm:$0x1]
  %v644 = vld [vmem:[#allocation3] sm:$0xff]
  %v645 = vld [vmem:[#allocation3 + $0x8] sm:$0xf]
  %v646 = vld [vmem:[#allocation5] sm:$0xff]
  %v647 = vld [vmem:[#allocation5 + $0x8] sm:$0xf]
  %v648 = vlaneseq
  %v649 = vshrl.u32 %v648, 7
  %v650 = vsub.s32 0, %v649
  %v651 = vrot.slane %v642, %v650
  %v652 = vsub.f32 %v651, %v644
  %v653 = vsub.f32 %v651, %v645
  %v654 = vadd.f32 %v652, 0.05
  %v655 = vadd.f32 %v653, 0.05
  %v656 = vlaneseq
  %v657 = vshrl.u32 %v656, 7
  %v658 = vsub.s32 0, %v657
  %v659 = vrot.slane %v643, %v658
  %v660 = vmul.f32 %v659, %v646
  %v661 = vmul.f32 %v659, %v647
  %vm662 = vcmp.gt.f32.partialorder %v660, 0.0
  %vm663 = vcmp.gt.f32.partialorder %v661, 0.0
  %vm664 = vcmp.gt.f32.partialorder %v654, 0.0
  %vm665 = vcmp.gt.f32.partialorder %v655, 0.0
  %vm666 = vmand %vm662, %vm664
  %vm667 = vmand %vm663, %vm665
  %v668 = vld [vmem:[#allocation6] sm:$0xff]
  %v669 = vld [vmem:[#allocation6 + $0x8] sm:$0xf]
  %v670 = vsel %vm666, %v654, 0.0
  %v671 = vsel %vm667, %v655, 0.0
  %v672 = vadd.f32 %v668, %v670
  %v673 = vadd.f32 %v669, %v671
  %674 = vst.msk [vmem:[#allocation6] sm:$0xff] %vm194, %v672
  %675 = vst.msk [vmem:[#allocation6 + $0x8] sm:$0xf] %vm196, %v673
  %v676 = vld [vmem:[#allocation7] sm:$0xff]
  %v677 = vld [vmem:[#allocation7 + $0x8] sm:$0xf]
  %v678 = vsel %vm666, 1, 0
  %v679 = vsel %vm667, 1, 0
  %v680 = vcvt.s32.f32 %v678
  %v681 = vcvt.s32.f32 %v679
  %v682 = vadd.f32 %v676, %v680
  %v683 = vadd.f32 %v677, %v681
  %684 = vst.msk [vmem:[#allocation7] sm:$0xff] %vm194, %v682
  %685 = vst.msk [vmem:[#allocation7 + $0x8] sm:$0xf] %vm196, %v683
  %v686 = vld [vmem:[#allocation3 + $0xa] sm:$0x1]
  %v687 = vld [vmem:[#allocation4 + $0xa] sm:$0x1]
  %v688 = vld [vmem:[#allocation3] sm:$0xff]
  %v689 = vld [vmem:[#allocation3 + $0x8] sm:$0xf]
  %v690 = vld [vmem:[#allocation5] sm:$0xff]
  %v691 = vld [vmem:[#allocation5 + $0x8] sm:$0xf]
  %v692 = vlaneseq
  %v693 = vshrl.u32 %v692, 7
  %v694 = vsub.s32 0, %v693
  %v695 = vrot.slane %v686, %v694
  %v696 = vsub.f32 %v695, %v688
  %v697 = vsub.f32 %v695, %v689
  %v698 = vadd.f32 %v696, 0.05
  %v699 = vadd.f32 %v697, 0.05
  %v700 = vlaneseq
  %v701 = vshrl.u32 %v700, 7
  %v702 = vsub.s32 0, %v701
  %v703 = vrot.slane %v687, %v702
  %v704 = vmul.f32 %v703, %v690
  %v705 = vmul.f32 %v703, %v691
  %vm706 = vcmp.gt.f32.partialorder %v704, 0.0
  %vm707 = vcmp.gt.f32.partialorder %v705, 0.0
  %vm708 = vcmp.gt.f32.partialorder %v698, 0.0
  %vm709 = vcmp.gt.f32.partialorder %v699, 0.0
  %vm710 = vmand %vm706, %vm708
  %vm711 = vmand %vm707, %vm709
  %v712 = vld [vmem:[#allocation6] sm:$0xff]
  %v713 = vld [vmem:[#allocation6 + $0x8] sm:$0xf]
  %v714 = vsel %vm710, %v698, 0.0
  %v715 = vsel %vm711, %v699, 0.0
  %v716 = vadd.f32 %v712, %v714
  %v717 = vadd.f32 %v713, %v715
  %718 = vst.msk [vmem:[#allocation6] sm:$0xff] %vm194, %v716
  %719 = vst.msk [vmem:[#allocation6 + $0x8] sm:$0xf] %vm196, %v717
  %v720 = vld [vmem:[#allocation7] sm:$0xff]
  %v721 = vld [vmem:[#allocation7 + $0x8] sm:$0xf]
  %v722 = vsel %vm710, 1, 0
  %v723 = vsel %vm711, 1, 0
  %v724 = vcvt.s32.f32 %v722
  %v725 = vcvt.s32.f32 %v723
  %v726 = vadd.f32 %v720, %v724
  %v727 = vadd.f32 %v721, %v725
  %728 = vst.msk [vmem:[#allocation7] sm:$0xff] %vm194, %v726
  %729 = vst.msk [vmem:[#allocation7 + $0x8] sm:$0xf] %vm196, %v727
  %v730 = vld [vmem:[#allocation3 + $0xb] sm:$0x1]
  %v731 = vld [vmem:[#allocation4 + $0xb] sm:$0x1]
  %v732 = vld [vmem:[#allocation3] sm:$0xff]
  %v733 = vld [vmem:[#allocation3 + $0x8] sm:$0xf]
  %v734 = vld [vmem:[#allocation5] sm:$0xff]
  %v735 = vld [vmem:[#allocation5 + $0x8] sm:$0xf]
  %v736 = vlaneseq
  %v737 = vshrl.u32 %v736, 7
  %v738 = vsub.s32 0, %v737
  %v739 = vrot.slane %v730, %v738
  %v740 = vsub.f32 %v739, %v732
  %v741 = vsub.f32 %v739, %v733
  %v742 = vadd.f32 %v740, 0.05
  %v743 = vadd.f32 %v741, 0.05
  %v744 = vlaneseq
  %v745 = vshrl.u32 %v744, 7
  %v746 = vsub.s32 0, %v745
  %v747 = vrot.slane %v731, %v746
  %v748 = vmul.f32 %v747, %v734
  %v749 = vmul.f32 %v747, %v735
  %vm750 = vcmp.gt.f32.partialorder %v748, 0.0
  %vm751 = vcmp.gt.f32.partialorder %v749, 0.0
  %vm752 = vcmp.gt.f32.partialorder %v742, 0.0
  %vm753 = vcmp.gt.f32.partialorder %v743, 0.0
  %vm754 = vmand %vm750, %vm752
  %vm755 = vmand %vm751, %vm753
  %v756 = vld [vmem:[#allocation6] sm:$0xff]
  %v757 = vld [vmem:[#allocation6 + $0x8] sm:$0xf]
  %v758 = vsel %vm754, %v742, 0.0
  %v759 = vsel %vm755, %v743, 0.0
  %v760 = vadd.f32 %v756, %v758
  %v761 = vadd.f32 %v757, %v759
  %762 = vst.msk [vmem:[#allocation6] sm:$0xff] %vm194, %v760
  %763 = vst.msk [vmem:[#allocation6 + $0x8] sm:$0xf] %vm196, %v761
  %v764 = vld [vmem:[#allocation7] sm:$0xff]
  %v765 = vld [vmem:[#allocation7 + $0x8] sm:$0xf]
  %v766 = vsel %vm754, 1, 0
  %v767 = vsel %vm755, 1, 0
  %v768 = vcvt.s32.f32 %v766
  %v769 = vcvt.s32.f32 %v767
  %v770 = vadd.f32 %v764, %v768
  %v771 = vadd.f32 %v765, %v769
  %772 = vst.msk [vmem:[#allocation7] sm:$0xff] %vm194, %v770
  %773 = vst.msk [vmem:[#allocation7 + $0x8] sm:$0xf] %vm196, %v771
  %v774 = vld [vmem:[#allocation6] sm:$0xff]
  %v775 = vld [vmem:[#allocation6 + $0x8] sm:$0xf]
  %v776 = vsel %vm194, %v774, 0.0
  %777 = vadd.xlane.f32.xlu0 %v776
  %v778 = vpop.xlane.xlu0 %777
  %v779 = vsel %vm196, %v775, 0.0
  %780 = vadd.xlane.f32.xlu0 %v779
  %v781 = vpop.xlane.xlu0 %780
  %v782 = vsel %vm69, %v781, 0.0
  %v783 = vadd.f32 %v778, %v782
  %v784 = vrot.slane %v783, 4
  %v785 = vadd.f32 %v783, %v784
  %v786 = vrot.slane %v785, 2
  %v787 = vadd.f32 %v785, %v786
  %v788 = vrot.slane %v787, 1
  %v789 = vadd.f32 %v787, %v788
  %v790 = vld [vmem:[#allocation7] sm:$0xff]
  %v791 = vld [vmem:[#allocation7 + $0x8] sm:$0xf]
  %v792 = vsel %vm194, %v790, 0.0
  %793 = vadd.xlane.f32.xlu0 %v792
  %v794 = vpop.xlane.xlu0 %793
  %v795 = vsel %vm196, %v791, 0.0
  %796 = vadd.xlane.f32.xlu0 %v795
  %v797 = vpop.xlane.xlu0 %796
  %v798 = vsel %vm69, %v797, 0.0
  %v799 = vadd.f32 %v794, %v798
  %v800 = vrot.slane %v799, 4
  %v801 = vadd.f32 %v799, %v800
  %v802 = vrot.slane %v801, 2
  %v803 = vadd.f32 %v801, %v802
  %v804 = vrot.slane %v803, 1
  %v805 = vadd.f32 %v803, %v804
  %vm806 = vcmask 7168
  %v807 = vsel %vm806, %v789, %v805
  %vm808 = vcmask 8192
  %809 = vst.msk [vmem:[%s2] sm:$0x1] %vm808, %v807
  // Predicated region
  $region6: #{forward.3} parent=0 // pred_check
    _
  $region7: #{forward.3} parent=0 // pred_check_branch
    %811 = sbr.rel (0) target = $region9
  $region8: #{forward.3} parent=0 // pred_region
    _
  $region9: #{forward.3} parent=0 // pred_fallthru
    _
  // Predicated region
  $region10: #{forward.3} parent=0 // pred_check
    _
  $region11: #{forward.3} parent=0 // pred_check_branch
    %813 = sbr.rel (0) target = $region13
  $region12: #{forward.3} parent=0 // pred_region
    _
  $region13: #{forward.3} parent=0 // pred_fallthru
    _

</llo_original>
